<compile_context>
chip_gen: v7x
topology: tpu7x:2x2x1
jax: 0.10.0
libtpu: 0.0.40
codegen_flags: <defaults>
</compile_context>

<pallas_src>
import jax
import jax.numpy as jnp
from jax import lax
from jax.experimental import pallas as pl
from jax.experimental.pallas import tpu as pltpu

LAYER_NORM_EPS = 1e-12
TILE = 256  # tokens per grid step


def _emb_kernel(iid_ref, vid_ref, jid_ref, tid_ref, pid_ref,   # (TILE, 1) int32, offset ids
                table_ref,                                      # (V_pad, E) f32, all tables concat
                gamma_ref, beta_ref,                            # (1, E) f32
                out_ref):                                       # (TILE, E)
    tile = out_ref.shape[0]
    v_pad = table_ref.shape[0]

    # Row indices of the combined table along the lane axis.
    iota = lax.broadcasted_iota(jnp.int32, (tile, v_pad), 1)

    # "Five-hot" selection matrix: exactly one 1.0 per table per token (offsets disjoint).
    sel = ((iid_ref[...] == iota).astype(jnp.float32)
           + (vid_ref[...] == iota).astype(jnp.float32)
           + (jid_ref[...] == iota).astype(jnp.float32)
           + (tid_ref[...] == iota).astype(jnp.float32)
           + (pid_ref[...] == iota).astype(jnp.float32))

    # Gather + 5-way sum as one MXU matmul against the VMEM-resident table.
    e = jnp.dot(sel, table_ref[...], preferred_element_type=jnp.float32)

    # LayerNorm in f32.
    mean = jnp.mean(e, axis=-1, keepdims=True)
    cen = e - mean
    var = jnp.mean(cen * cen, axis=-1, keepdims=True)
    inv = lax.rsqrt(var + LAYER_NORM_EPS)
    y = cen * inv * gamma_ref[...] + beta_ref[...]
    out_ref[...] = y.astype(out_ref.dtype)
    # TODO(synk): dropout implemented as eval-mode identity; training-mode dropout would
    # require pltpu.prng_seed / pltpu.prng_random_bits.


def albert_tcr_embeddings(input_ids, v_gene_ids, j_gene_ids, token_type_ids,
                          position_ids, word_tbl, pos_tbl, tt_tbl, vg_tbl, jg_tbl,
                          gamma, beta, *, tile=TILE):
    B, S = input_ids.shape
    E = word_tbl.shape[1]
    n = B * S

    tables = (word_tbl, vg_tbl, jg_tbl, tt_tbl, pos_tbl)
    id_arrays = (input_ids, v_gene_ids, j_gene_ids, token_type_ids, position_ids)

    # Offsets of each table inside the concatenated table.
    offsets, off = [], 0
    for t in tables:
        offsets.append(off)
        off += t.shape[0]
    v_total = off
    v_pad = ((v_total + 7) // 8) * 8

    combined = jnp.concatenate([t.astype(jnp.float32) for t in tables], axis=0)
    combined = jnp.pad(combined, ((0, v_pad - v_total), (0, 0)))
    # NOTE: for a real-size ALBERT vocab on v7x, keep the word table in HBM (pl.ANY) and
    # gather per-tile instead of pinning it resident; here all tables total well under 1 MiB.

    n_pad = ((n + tile - 1) // tile) * tile

    def prep(ids, tbl, o):
        # Clip (mirrors jnp.take clipping; avoids OOB rows), add offset, pad to n_pad, (n_pad, 1).
        c = jnp.clip(ids.reshape(n).astype(jnp.int32), 0, tbl.shape[0] - 1) + o
        return jnp.pad(c, (0, n_pad - n)).reshape(n_pad, 1)

    id_cols = [prep(ids, tbl, o) for ids, tbl, o in zip(id_arrays, tables, offsets)]

    gamma2 = gamma.reshape(1, E).astype(jnp.float32)
    beta2 = beta.reshape(1, E).astype(jnp.float32)

    grid_spec = pltpu.PrefetchScalarGridSpec(
        num_scalar_prefetch=0,
        grid=(n_pad // tile,),
        in_specs=[
            pl.BlockSpec((tile, 1), lambda t: (t, 0)),   # input_ids (offset)
            pl.BlockSpec((tile, 1), lambda t: (t, 0)),   # v_gene_ids (offset)
            pl.BlockSpec((tile, 1), lambda t: (t, 0)),   # j_gene_ids (offset)
            pl.BlockSpec((tile, 1), lambda t: (t, 0)),   # token_type_ids (offset)
            pl.BlockSpec((tile, 1), lambda t: (t, 0)),   # position_ids (offset)
            pl.BlockSpec((v_pad, E), lambda t: (0, 0)),  # combined table, VMEM resident
            pl.BlockSpec((1, E), lambda t: (0, 0)),      # gamma
            pl.BlockSpec((1, E), lambda t: (0, 0)),      # beta
        ],
        out_specs=pl.BlockSpec((tile, E), lambda t: (t, 0)),
    )

    out = pl.pallas_call(
        _emb_kernel,
        out_shape=jax.ShapeDtypeStruct((n_pad, E), jnp.float32),
        grid_spec=grid_spec,
        compiler_params=pltpu.CompilerParams(
            dimension_semantics=("parallel",)),  # independent tokens -> megacore sharding on v7x
    )(*id_cols, combined, gamma2, beta2)

    return out[:n].reshape(B, S, E)


def _reference(input_ids, v_ids, j_ids, tt_ids, pos_ids,
               word_tbl, pos_tbl, tt_tbl, vg_tbl, jg_tbl, gamma, beta):
    e = (jnp.take(word_tbl, input_ids, axis=0)
         + jnp.take(vg_tbl, v_ids, axis=0)
         + jnp.take(jg_tbl, j_ids, axis=0)
         + jnp.take(tt_tbl, tt_ids, axis=0)
         + jnp.take(pos_tbl, pos_ids, axis=0))
    mean = jnp.mean(e, axis=-1, keepdims=True)
    var = jnp.mean((e - mean) ** 2, axis=-1, keepdims=True)
    return (e - mean) * lax.rsqrt(var + LAYER_NORM_EPS) * gamma + beta


if __name__ == "__main__":
    # Small config consistent with the module's __init__.
    B, S = 2, 8
    vocab_size = 32
    embedding_size = 128
    max_position_embeddings = 16
    type_vocab_size = 2
    pad_token_id = 0

    key = jax.random.PRNGKey(0)
    kw, kp, kt, kv, kj, kg, kb, ki, kvi, kji = jax.random.split(key, 10)

    # Deterministic parameter init (N(0, 0.02) like BERT/ALBERT).
    word_tbl = 0.02 * jax.random.normal(kw, (vocab_size, embedding_size), jnp.float32)
    word_tbl = word_tbl.at[pad_token_id].set(0.0)                       # padding_idx
    pos_tbl = 0.02 * jax.random.normal(kp, (max_position_embeddings, embedding_size), jnp.float32)
    tt_tbl = 0.02 * jax.random.normal(kt, (type_vocab_size, embedding_size), jnp.float32)
    vg_tbl = 0.02 * jax.random.normal(kv, (65, embedding_size), jnp.float32)
    vg_tbl = vg_tbl.at[64].set(0.0)                                     # padding_idx=64
    jg_tbl = 0.02 * jax.random.normal(kj, (15, embedding_size), jnp.float32)
    jg_tbl = jg_tbl.at[14].set(0.0)                                     # padding_idx=14
    gamma = 1.0 + 0.01 * jax.random.normal(kg, (embedding_size,), jnp.float32)
    beta = 0.01 * jax.random.normal(kb, (embedding_size,), jnp.float32)

    # Inputs.
    input_ids = jax.random.randint(ki, (B, S), 1, vocab_size, jnp.int32)
    v_gene_ids = jax.random.randint(kvi, (B, S), 0, 64, jnp.int32)
    j_gene_ids = jax.random.randint(kji, (B, S), 0, 14, jnp.int32)
    token_type_ids = jnp.zeros((B, S), jnp.int32)                       # buffered default
    position_ids = jnp.broadcast_to(jnp.arange(S, dtype=jnp.int32), (B, S))

    out = albert_tcr_embeddings(input_ids, v_gene_ids, j_gene_ids, token_type_ids,
                                position_ids, word_tbl, pos_tbl, tt_tbl, vg_tbl,
                                jg_tbl, gamma, beta)
    out = jax.block_until_ready(out)

    ref = _reference(input_ids, v_gene_ids, j_gene_ids, token_type_ids, position_ids,
                     word_tbl, pos_tbl, tt_tbl, vg_tbl, jg_tbl, gamma, beta)
    assert out.shape == (B, S, embedding_size)
    assert jnp.allclose(out, ref, atol=1e-5, rtol=1e-5)
    print("KERNEL_OK")
</pallas_src>

<mosaic_0001>
module attributes {stable_mosaic.version = 11 : i64} {
  func.func @_emb_kernel(%arg0: i32, %arg1: memref<256x1xi32, #tpu.memory_space<vmem>>, %arg2: memref<256x1xi32, #tpu.memory_space<vmem>>, %arg3: memref<256x1xi32, #tpu.memory_space<vmem>>, %arg4: memref<256x1xi32, #tpu.memory_space<vmem>>, %arg5: memref<256x1xi32, #tpu.memory_space<vmem>>, %arg6: memref<136x128xf32, #tpu.memory_space<vmem>>, %arg7: memref<1x128xf32, #tpu.memory_space<vmem>>, %arg8: memref<1x128xf32, #tpu.memory_space<vmem>>, %arg9: memref<256x128xf32, #tpu.memory_space<vmem>>) attributes {dimension_semantics = [#tpu.dimension_semantics<parallel>], iteration_bounds = array<i64: 1>, scalar_prefetch = 0 : i64, scratch_operands = 0 : i64, tpu.core_type = #tpu.core_type<tc>, window_params = [{transform_indices = @transform_0, window_bounds = array<i64: 256, 1>}, {transform_indices = @transform_1, window_bounds = array<i64: 256, 1>}, {transform_indices = @transform_2, window_bounds = array<i64: 256, 1>}, {transform_indices = @transform_3, window_bounds = array<i64: 256, 1>}, {transform_indices = @transform_4, window_bounds = array<i64: 256, 1>}, {pipeline_mode = #tpu.pipeline_mode<synchronous>, transform_indices = @transform_5, window_bounds = array<i64: 136, 128>}, {pipeline_mode = #tpu.pipeline_mode<synchronous>, transform_indices = @transform_6, window_bounds = array<i64: 1, 128>}, {pipeline_mode = #tpu.pipeline_mode<synchronous>, transform_indices = @transform_7, window_bounds = array<i64: 1, 128>}, {transform_indices = @transform_8, window_bounds = array<i64: 256, 128>}]} {
    %0 = tpu.iota {dimensions = array<i32: 1>} : vector<256x136xi32>
    %c0 = arith.constant 0 : index
    %c0_0 = arith.constant 0 : index
    %1 = vector.load %arg1[%c0, %c0_0] : memref<256x1xi32, #tpu.memory_space<vmem>>, vector<256x1xi32>
    %2 = vector.broadcast %1 : vector<256x1xi32> to vector<256x136xi32>
    %3 = arith.cmpi eq, %2, %0 : vector<256x136xi32>
    %4 = arith.extui %3 : vector<256x136xi1> to vector<256x136xi32>
    %5 = arith.sitofp %4 : vector<256x136xi32> to vector<256x136xf32>
    %c0_1 = arith.constant 0 : index
    %c0_2 = arith.constant 0 : index
    %6 = vector.load %arg2[%c0_1, %c0_2] : memref<256x1xi32, #tpu.memory_space<vmem>>, vector<256x1xi32>
    %7 = vector.broadcast %6 : vector<256x1xi32> to vector<256x136xi32>
    %8 = arith.cmpi eq, %7, %0 : vector<256x136xi32>
    %9 = arith.extui %8 : vector<256x136xi1> to vector<256x136xi32>
    %10 = arith.sitofp %9 : vector<256x136xi32> to vector<256x136xf32>
    %11 = arith.addf %5, %10 : vector<256x136xf32>
    %c0_3 = arith.constant 0 : index
    %c0_4 = arith.constant 0 : index
    %12 = vector.load %arg3[%c0_3, %c0_4] : memref<256x1xi32, #tpu.memory_space<vmem>>, vector<256x1xi32>
    %13 = vector.broadcast %12 : vector<256x1xi32> to vector<256x136xi32>
    %14 = arith.cmpi eq, %13, %0 : vector<256x136xi32>
    %15 = arith.extui %14 : vector<256x136xi1> to vector<256x136xi32>
    %16 = arith.sitofp %15 : vector<256x136xi32> to vector<256x136xf32>
    %17 = arith.addf %11, %16 : vector<256x136xf32>
    %c0_5 = arith.constant 0 : index
    %c0_6 = arith.constant 0 : index
    %18 = vector.load %arg4[%c0_5, %c0_6] : memref<256x1xi32, #tpu.memory_space<vmem>>, vector<256x1xi32>
    %19 = vector.broadcast %18 : vector<256x1xi32> to vector<256x136xi32>
    %20 = arith.cmpi eq, %19, %0 : vector<256x136xi32>
    %21 = arith.extui %20 : vector<256x136xi1> to vector<256x136xi32>
    %22 = arith.sitofp %21 : vector<256x136xi32> to vector<256x136xf32>
    %23 = arith.addf %17, %22 : vector<256x136xf32>
    %c0_7 = arith.constant 0 : index
    %c0_8 = arith.constant 0 : index
    %24 = vector.load %arg5[%c0_7, %c0_8] : memref<256x1xi32, #tpu.memory_space<vmem>>, vector<256x1xi32>
    %25 = vector.broadcast %24 : vector<256x1xi32> to vector<256x136xi32>
    %26 = arith.cmpi eq, %25, %0 : vector<256x136xi32>
    %27 = arith.extui %26 : vector<256x136xi1> to vector<256x136xi32>
    %28 = arith.sitofp %27 : vector<256x136xi32> to vector<256x136xf32>
    %29 = arith.addf %23, %28 : vector<256x136xf32>
    %c0_9 = arith.constant 0 : index
    %c0_10 = arith.constant 0 : index
    %30 = vector.load %arg6[%c0_9, %c0_10] : memref<136x128xf32, #tpu.memory_space<vmem>>, vector<136x128xf32>
    %cst = arith.constant dense<0.000000e+00> : vector<256x128xf32>
    %31 = tpu.matmul %29, %30, %cst {dimension_numbers = #tpu.dot_dimension_numbers<[1], [0], [0], [1], [0, 0, 1, 1], [], []>} : vector<256x136xf32>, vector<136x128xf32>, vector<256x128xf32> -> vector<256x128xf32>
    %cst_11 = arith.constant dense<0.000000e+00> : vector<256xf32>
    %32 = vector.multi_reduction <add>, %31, %cst_11 [1] : vector<256x128xf32> to vector<256xf32>
    %33 = vector.shape_cast %32 : vector<256xf32> to vector<256x1xf32>
    %cst_12 = arith.constant 1.280000e+02 : f32
    %34 = vector.broadcast %cst_12 : f32 to vector<256x1xf32>
    %35 = arith.divf %33, %34 : vector<256x1xf32>
    %36 = vector.broadcast %35 : vector<256x1xf32> to vector<256x128xf32>
    %37 = arith.subf %31, %36 : vector<256x128xf32>
    %38 = arith.mulf %37, %37 : vector<256x128xf32>
    %cst_13 = arith.constant dense<0.000000e+00> : vector<256xf32>
    %39 = vector.multi_reduction <add>, %38, %cst_13 [1] : vector<256x128xf32> to vector<256xf32>
    %40 = vector.shape_cast %39 : vector<256xf32> to vector<256x1xf32>
    %cst_14 = arith.constant 1.280000e+02 : f32
    %41 = vector.broadcast %cst_14 : f32 to vector<256x1xf32>
    %42 = arith.divf %40, %41 : vector<256x1xf32>
    %cst_15 = arith.constant 9.99999996E-13 : f32
    %43 = vector.broadcast %cst_15 : f32 to vector<256x1xf32>
    %44 = arith.addf %42, %43 : vector<256x1xf32>
    %45 = math.rsqrt %44 : vector<256x1xf32>
    %46 = vector.broadcast %45 : vector<256x1xf32> to vector<256x128xf32>
    %47 = arith.mulf %37, %46 : vector<256x128xf32>
    %c0_16 = arith.constant 0 : index
    %c0_17 = arith.constant 0 : index
    %48 = vector.load %arg7[%c0_16, %c0_17] : memref<1x128xf32, #tpu.memory_space<vmem>>, vector<1x128xf32>
    %49 = vector.broadcast %48 : vector<1x128xf32> to vector<256x128xf32>
    %50 = arith.mulf %47, %49 : vector<256x128xf32>
    %c0_18 = arith.constant 0 : index
    %c0_19 = arith.constant 0 : index
    %51 = vector.load %arg8[%c0_18, %c0_19] : memref<1x128xf32, #tpu.memory_space<vmem>>, vector<1x128xf32>
    %52 = vector.broadcast %51 : vector<1x128xf32> to vector<256x128xf32>
    %53 = arith.addf %50, %52 : vector<256x128xf32>
    %c0_20 = arith.constant 0 : index
    %c0_21 = arith.constant 0 : index
    %54 = vector.load %arg9[%c0_20, %c0_21] : memref<256x128xf32, #tpu.memory_space<vmem>>, vector<256x128xf32>
    tpu.vector_store %arg9[%c0_20, %c0_21], %53 {strides = array<i32>} : memref<256x128xf32, #tpu.memory_space<vmem>>, vector<256x128xf32>,
    return
  }
  func.func @transform_0(%arg0: i32) -> (i32, i32) {
    %c0_i32 = arith.constant 0 : i32
    %c0_i32_0 = arith.constant 0 : i32
    return %arg0, %c0_i32 : i32, i32
  }
  func.func @transform_1(%arg0: i32) -> (i32, i32) {
    %c0_i32 = arith.constant 0 : i32
    %c0_i32_0 = arith.constant 0 : i32
    return %arg0, %c0_i32 : i32, i32
  }
  func.func @transform_2(%arg0: i32) -> (i32, i32) {
    %c0_i32 = arith.constant 0 : i32
    %c0_i32_0 = arith.constant 0 : i32
    return %arg0, %c0_i32 : i32, i32
  }
  func.func @transform_3(%arg0: i32) -> (i32, i32) {
    %c0_i32 = arith.constant 0 : i32
    %c0_i32_0 = arith.constant 0 : i32
    return %arg0, %c0_i32 : i32, i32
  }
  func.func @transform_4(%arg0: i32) -> (i32, i32) {
    %c0_i32 = arith.constant 0 : i32
    %c0_i32_0 = arith.constant 0 : i32
    return %arg0, %c0_i32 : i32, i32
  }
  func.func @transform_5(%arg0: i32) -> (i32, i32) {
    %c0_i32 = arith.constant 0 : i32
    %c0_i32_0 = arith.constant 0 : i32
    %c0_i32_1 = arith.constant 0 : i32
    return %c0_i32, %c0_i32_0 : i32, i32
  }
  func.func @transform_6(%arg0: i32) -> (i32, i32) {
    %c0_i32 = arith.constant 0 : i32
    %c0_i32_0 = arith.constant 0 : i32
    %c0_i32_1 = arith.constant 0 : i32
    return %c0_i32, %c0_i32_0 : i32, i32
  }
  func.func @transform_7(%arg0: i32) -> (i32, i32) {
    %c0_i32 = arith.constant 0 : i32
    %c0_i32_0 = arith.constant 0 : i32
    %c0_i32_1 = arith.constant 0 : i32
    return %c0_i32, %c0_i32_0 : i32, i32
  }
  func.func @transform_8(%arg0: i32) -> (i32, i32) {
    %c0_i32 = arith.constant 0 : i32
    %c0_i32_0 = arith.constant 0 : i32
    return %arg0, %c0_i32 : i32, i32
  }
}

</mosaic_0001>

<llo_original>
// kernel: tpu_custom_call.1
$region0: #{tpu_custom_call.1}
  #allocation0 [shape = 'u32[]', space=smem, size = 0x4, offset = 0x4, fixed_abs, tag = 'smem constant byte address 0x4 - core index']
  #allocation1 [shape = 'u32[144,128]{1,0:T(1,128)}', space=vmem, size = 0x12000, scoped, tag = 'internal scratch']
  %s0 = inlined_call_operand.vmem [shape: s32[256,1], index: 0, kind: input, shape index: {}]
  %s1 = inlined_call_operand.vmem [shape: s32[256,1], index: 1, kind: input, shape index: {}]
  %s2 = inlined_call_operand.vmem [shape: s32[256,1], index: 2, kind: input, shape index: {}]
  %s3 = inlined_call_operand.vmem [shape: s32[256,1], index: 3, kind: input, shape index: {}]
  %s4 = inlined_call_operand.vmem [shape: s32[256,1], index: 4, kind: input, shape index: {}]
  %s5 = inlined_call_operand.vmem [shape: f32[136,128], index: 5, kind: input, shape index: {}]
  %s6 = inlined_call_operand.vmem [shape: f32[1,128], index: 6, kind: input, shape index: {}]
  %s7 = inlined_call_operand.vmem [shape: f32[1,128], index: 7, kind: input, shape index: {}]
  %s8 = inlined_call_operand.hbm [shape: f32[256,128], index: 8, kind: output, shape index: {}]
  %s9 = sld [smem:[#allocation0]]
  $region42: #{tpu_custom_call.1} parent=0
    _
  %s11 = ssub.s32 1, %s9
  %s12 = scalar_select 0, %s11, %s9
  $region1: #{tpu_custom_call.1} parent=0
    #allocation2 [shape = 'u8[131072]{0}', space=vmem, size = 0x20000, scoped, tag = 'output window, operand 0, single buffered']
    #allocation3 [shape = 's32[1]{0}', space=sflag, size = 0x4, scoped, tag = 'scoped memory for tpu_custom_call.1']
    %13 = vsyncpa [#allocation3], 0
    // Predicated region
    $region2: #{tpu_custom_call.1} parent=1 // pred_check
      _
    $region3: #{tpu_custom_call.1} parent=1 // pred_check_branch
      %15 = sbr.rel (0) target = $region5
    $region4: #{tpu_custom_call.1} parent=1 // pred_region
      _
    $region5: #{tpu_custom_call.1} parent=1 // pred_fallthru
      _
    // Predicated region
    $region6: #{tpu_custom_call.1} parent=1 // pred_check
      _
    $region7: #{tpu_custom_call.1} parent=1 // pred_check_branch
      %17 = sbr.rel (0) target = $region9
    $region8: #{tpu_custom_call.1} parent=1 // pred_region
      _
    $region9: #{tpu_custom_call.1} parent=1 // pred_fallthru
      _
    // Predicated region
    $region10: #{tpu_custom_call.1} parent=1 // pred_check
      _
    $region11: #{tpu_custom_call.1} parent=1 // pred_check_branch
      %19 = sbr.rel (0) target = $region13
    $region12: #{tpu_custom_call.1} parent=1 // pred_region
      _
    $region13: #{tpu_custom_call.1} parent=1 // pred_fallthru
      _
    // Predicated region
    $region14: #{tpu_custom_call.1} parent=1 // pred_check
      _
    $region15: #{tpu_custom_call.1} parent=1 // pred_check_branch
      %21 = sbr.rel (0) target = $region17
    $region16: #{tpu_custom_call.1} parent=1 // pred_region
      _
    $region17: #{tpu_custom_call.1} parent=1 // pred_fallthru
      _
    // Predicated region
    $region18: #{tpu_custom_call.1} parent=1 // pred_check
      _
    $region19: #{tpu_custom_call.1} parent=1 // pred_check_branch
      %23 = sbr.rel (0) target = $region21
    $region20: #{tpu_custom_call.1} parent=1 // pred_region
      _
    $region21: #{tpu_custom_call.1} parent=1 // pred_fallthru
      _
    // Predicated region
    $region22: #{tpu_custom_call.1} parent=1 // pred_check
      _
    $region23: #{tpu_custom_call.1} parent=1 // pred_check_branch
      %25 = sbr.rel (0) target = $region25
    $region24: #{tpu_custom_call.1} parent=1 // pred_region
      _
    $region25: #{tpu_custom_call.1} parent=1 // pred_fallthru
      _
    // Predicated region
    $region26: #{tpu_custom_call.1} parent=1 // pred_check
      _
    $region27: #{tpu_custom_call.1} parent=1 // pred_check_branch
      %27 = sbr.rel (0) target = $region29
    $region28: #{tpu_custom_call.1} parent=1 // pred_region
      _
    $region29: #{tpu_custom_call.1} parent=1 // pred_fallthru
      _
    // Predicated region
    $region30: #{tpu_custom_call.1} parent=1 // pred_check
      _
    $region31: #{tpu_custom_call.1} parent=1 // pred_check_branch
      %29 = sbr.rel (0) target = $region33
    $region32: #{tpu_custom_call.1} parent=1 // pred_region
      _
    $region33: #{tpu_custom_call.1} parent=1 // pred_fallthru
      _
    %v30 = vlaneseq
    %v31 = vand.u32 %v30, 127
    %v32 = vadd.s32 %v31, 128
    %v33 = vld [vmem:[%s0] sm:$0xff]
    %v34 = vld [vmem:[%s0 + $0x8] sm:$0xff]
    %v35 = vld [vmem:[%s0 + $0x10] sm:$0xff]
    %v36 = vld [vmem:[%s0 + $0x18] sm:$0xff]
    %v37 = vld [vmem:[%s0 + $0x20] sm:$0xff]
    %v38 = vld [vmem:[%s0 + $0x28] sm:$0xff]
    %v39 = vld [vmem:[%s0 + $0x30] sm:$0xff]
    %v40 = vld [vmem:[%s0 + $0x38] sm:$0xff]
    %v41 = vld [vmem:[%s0 + $0x40] sm:$0xff]
    %v42 = vld [vmem:[%s0 + $0x48] sm:$0xff]
    %v43 = vld [vmem:[%s0 + $0x50] sm:$0xff]
    %v44 = vld [vmem:[%s0 + $0x58] sm:$0xff]
    %v45 = vld [vmem:[%s0 + $0x60] sm:$0xff]
    %v46 = vld [vmem:[%s0 + $0x68] sm:$0xff]
    %v47 = vld [vmem:[%s0 + $0x70] sm:$0xff]
    %v48 = vld [vmem:[%s0 + $0x78] sm:$0xff]
    %v49 = vld [vmem:[%s0 + $0x80] sm:$0xff]
    %v50 = vld [vmem:[%s0 + $0x88] sm:$0xff]
    %v51 = vld [vmem:[%s0 + $0x90] sm:$0xff]
    %v52 = vld [vmem:[%s0 + $0x98] sm:$0xff]
    %v53 = vld [vmem:[%s0 + $0xa0] sm:$0xff]
    %v54 = vld [vmem:[%s0 + $0xa8] sm:$0xff]
    %v55 = vld [vmem:[%s0 + $0xb0] sm:$0xff]
    %v56 = vld [vmem:[%s0 + $0xb8] sm:$0xff]
    %v57 = vld [vmem:[%s0 + $0xc0] sm:$0xff]
    %v58 = vld [vmem:[%s0 + $0xc8] sm:$0xff]
    %v59 = vld [vmem:[%s0 + $0xd0] sm:$0xff]
    %v60 = vld [vmem:[%s0 + $0xd8] sm:$0xff]
    %v61 = vld [vmem:[%s0 + $0xe0] sm:$0xff]
    %v62 = vld [vmem:[%s0 + $0xe8] sm:$0xff]
    %v63 = vld [vmem:[%s0 + $0xf0] sm:$0xff]
    %v64 = vld [vmem:[%s0 + $0xf8] sm:$0xff]
    %65 = vset.pattern.permute.xlu0 0
    %66 = vperm.xlu0 %65, %v33
    %v67 = vpop.permute.xlu0 %66
    %68 = vset.pattern.permute.xlu0 0
    %69 = vperm.xlu0 %68, %v34
    %v70 = vpop.permute.xlu0 %69
    %71 = vset.pattern.permute.xlu0 0
    %72 = vperm.xlu0 %71, %v35
    %v73 = vpop.permute.xlu0 %72
    %74 = vset.pattern.permute.xlu0 0
    %75 = vperm.xlu0 %74, %v36
    %v76 = vpop.permute.xlu0 %75
    %77 = vset.pattern.permute.xlu0 0
    %78 = vperm.xlu0 %77, %v37
    %v79 = vpop.permute.xlu0 %78
    %80 = vset.pattern.permute.xlu0 0
    %81 = vperm.xlu0 %80, %v38
    %v82 = vpop.permute.xlu0 %81
    %83 = vset.pattern.permute.xlu0 0
    %84 = vperm.xlu0 %83, %v39
    %v85 = vpop.permute.xlu0 %84
    %86 = vset.pattern.permute.xlu0 0
    %87 = vperm.xlu0 %86, %v40
    %v88 = vpop.permute.xlu0 %87
    %89 = vset.pattern.permute.xlu0 0
    %90 = vperm.xlu0 %89, %v41
    %v91 = vpop.permute.xlu0 %90
    %92 = vset.pattern.permute.xlu0 0
    %93 = vperm.xlu0 %92, %v42
    %v94 = vpop.permute.xlu0 %93
    %95 = vset.pattern.permute.xlu0 0
    %96 = vperm.xlu0 %95, %v43
    %v97 = vpop.permute.xlu0 %96
    %98 = vset.pattern.permute.xlu0 0
    %99 = vperm.xlu0 %98, %v44
    %v100 = vpop.permute.xlu0 %99
    %101 = vset.pattern.permute.xlu0 0
    %102 = vperm.xlu0 %101, %v45
    %v103 = vpop.permute.xlu0 %102
    %104 = vset.pattern.permute.xlu0 0
    %105 = vperm.xlu0 %104, %v46
    %v106 = vpop.permute.xlu0 %105
    %107 = vset.pattern.permute.xlu0 0
    %108 = vperm.xlu0 %107, %v47
    %v109 = vpop.permute.xlu0 %108
    %110 = vset.pattern.permute.xlu0 0
    %111 = vperm.xlu0 %110, %v48
    %v112 = vpop.permute.xlu0 %111
    %113 = vset.pattern.permute.xlu0 0
    %114 = vperm.xlu0 %113, %v49
    %v115 = vpop.permute.xlu0 %114
    %116 = vset.pattern.permute.xlu0 0
    %117 = vperm.xlu0 %116, %v50
    %v118 = vpop.permute.xlu0 %117
    %119 = vset.pattern.permute.xlu0 0
    %120 = vperm.xlu0 %119, %v51
    %v121 = vpop.permute.xlu0 %120
    %122 = vset.pattern.permute.xlu0 0
    %123 = vperm.xlu0 %122, %v52
    %v124 = vpop.permute.xlu0 %123
    %125 = vset.pattern.permute.xlu0 0
    %126 = vperm.xlu0 %125, %v53
    %v127 = vpop.permute.xlu0 %126
    %128 = vset.pattern.permute.xlu0 0
    %129 = vperm.xlu0 %128, %v54
    %v130 = vpop.permute.xlu0 %129
    %131 = vset.pattern.permute.xlu0 0
    %132 = vperm.xlu0 %131, %v55
    %v133 = vpop.permute.xlu0 %132
    %134 = vset.pattern.permute.xlu0 0
    %135 = vperm.xlu0 %134, %v56
    %v136 = vpop.permute.xlu0 %135
    %137 = vset.pattern.permute.xlu0 0
    %138 = vperm.xlu0 %137, %v57
    %v139 = vpop.permute.xlu0 %138
    %140 = vset.pattern.permute.xlu0 0
    %141 = vperm.xlu0 %140, %v58
    %v142 = vpop.permute.xlu0 %141
    %143 = vset.pattern.permute.xlu0 0
    %144 = vperm.xlu0 %143, %v59
    %v145 = vpop.permute.xlu0 %144
    %146 = vset.pattern.permute.xlu0 0
    %147 = vperm.xlu0 %146, %v60
    %v148 = vpop.permute.xlu0 %147
    %149 = vset.pattern.permute.xlu0 0
    %150 = vperm.xlu0 %149, %v61
    %v151 = vpop.permute.xlu0 %150
    %152 = vset.pattern.permute.xlu0 0
    %153 = vperm.xlu0 %152, %v62
    %v154 = vpop.permute.xlu0 %153
    %155 = vset.pattern.permute.xlu0 0
    %156 = vperm.xlu0 %155, %v63
    %v157 = vpop.permute.xlu0 %156
    %158 = vset.pattern.permute.xlu0 0
    %159 = vperm.xlu0 %158, %v64
    %v160 = vpop.permute.xlu0 %159
    %vm161 = vcmp.eq.s32.totalorder %v67, %v31
    %vm162 = vcmp.eq.s32.totalorder %v67, %v32
    %vm163 = vcmp.eq.s32.totalorder %v70, %v31
    %vm164 = vcmp.eq.s32.totalorder %v70, %v32
    %vm165 = vcmp.eq.s32.totalorder %v73, %v31
    %vm166 = vcmp.eq.s32.totalorder %v73, %v32
    %vm167 = vcmp.eq.s32.totalorder %v76, %v31
    %vm168 = vcmp.eq.s32.totalorder %v76, %v32
    %vm169 = vcmp.eq.s32.totalorder %v79, %v31
    %vm170 = vcmp.eq.s32.totalorder %v79, %v32
    %vm171 = vcmp.eq.s32.totalorder %v82, %v31
    %vm172 = vcmp.eq.s32.totalorder %v82, %v32
    %vm173 = vcmp.eq.s32.totalorder %v85, %v31
    %vm174 = vcmp.eq.s32.totalorder %v85, %v32
    %vm175 = vcmp.eq.s32.totalorder %v88, %v31
    %vm176 = vcmp.eq.s32.totalorder %v88, %v32
    %vm177 = vcmp.eq.s32.totalorder %v91, %v31
    %vm178 = vcmp.eq.s32.totalorder %v91, %v32
    %vm179 = vcmp.eq.s32.totalorder %v94, %v31
    %vm180 = vcmp.eq.s32.totalorder %v94, %v32
    %vm181 = vcmp.eq.s32.totalorder %v97, %v31
    %vm182 = vcmp.eq.s32.totalorder %v97, %v32
    %vm183 = vcmp.eq.s32.totalorder %v100, %v31
    %vm184 = vcmp.eq.s32.totalorder %v100, %v32
    %vm185 = vcmp.eq.s32.totalorder %v103, %v31
    %vm186 = vcmp.eq.s32.totalorder %v103, %v32
    %vm187 = vcmp.eq.s32.totalorder %v106, %v31
    %vm188 = vcmp.eq.s32.totalorder %v106, %v32
    %vm189 = vcmp.eq.s32.totalorder %v109, %v31
    %vm190 = vcmp.eq.s32.totalorder %v109, %v32
    %vm191 = vcmp.eq.s32.totalorder %v112, %v31
    %vm192 = vcmp.eq.s32.totalorder %v112, %v32
    %vm193 = vcmp.eq.s32.totalorder %v115, %v31
    %vm194 = vcmp.eq.s32.totalorder %v115, %v32
    %vm195 = vcmp.eq.s32.totalorder %v118, %v31
    %vm196 = vcmp.eq.s32.totalorder %v118, %v32
    %vm197 = vcmp.eq.s32.totalorder %v121, %v31
    %vm198 = vcmp.eq.s32.totalorder %v121, %v32
    %vm199 = vcmp.eq.s32.totalorder %v124, %v31
    %vm200 = vcmp.eq.s32.totalorder %v124, %v32
    %vm201 = vcmp.eq.s32.totalorder %v127, %v31
    %vm202 = vcmp.eq.s32.totalorder %v127, %v32
    %vm203 = vcmp.eq.s32.totalorder %v130, %v31
    %vm204 = vcmp.eq.s32.totalorder %v130, %v32
    %vm205 = vcmp.eq.s32.totalorder %v133, %v31
    %vm206 = vcmp.eq.s32.totalorder %v133, %v32
    %vm207 = vcmp.eq.s32.totalorder %v136, %v31
    %vm208 = vcmp.eq.s32.totalorder %v136, %v32
    %vm209 = vcmp.eq.s32.totalorder %v139, %v31
    %vm210 = vcmp.eq.s32.totalorder %v139, %v32
    %vm211 = vcmp.eq.s32.totalorder %v142, %v31
    %vm212 = vcmp.eq.s32.totalorder %v142, %v32
    %vm213 = vcmp.eq.s32.totalorder %v145, %v31
    %vm214 = vcmp.eq.s32.totalorder %v145, %v32
    %vm215 = vcmp.eq.s32.totalorder %v148, %v31
    %vm216 = vcmp.eq.s32.totalorder %v148, %v32
    %vm217 = vcmp.eq.s32.totalorder %v151, %v31
    %vm218 = vcmp.eq.s32.totalorder %v151, %v32
    %vm219 = vcmp.eq.s32.totalorder %v154, %v31
    %vm220 = vcmp.eq.s32.totalorder %v154, %v32
    %vm221 = vcmp.eq.s32.totalorder %v157, %v31
    %vm222 = vcmp.eq.s32.totalorder %v157, %v32
    %vm223 = vcmp.eq.s32.totalorder %v160, %v31
    %vm224 = vcmp.eq.s32.totalorder %v160, %v32
    %v225 = vsel %vm161, 1, 0
    %v226 = vsel %vm162, 1, 0
    %v227 = vsel %vm163, 1, 0
    %v228 = vsel %vm164, 1, 0
    %v229 = vsel %vm165, 1, 0
    %v230 = vsel %vm166, 1, 0
    %v231 = vsel %vm167, 1, 0
    %v232 = vsel %vm168, 1, 0
    %v233 = vsel %vm169, 1, 0
    %v234 = vsel %vm170, 1, 0
    %v235 = vsel %vm171, 1, 0
    %v236 = vsel %vm172, 1, 0
    %v237 = vsel %vm173, 1, 0
    %v238 = vsel %vm174, 1, 0
    %v239 = vsel %vm175, 1, 0
    %v240 = vsel %vm176, 1, 0
    %v241 = vsel %vm177, 1, 0
    %v242 = vsel %vm178, 1, 0
    %v243 = vsel %vm179, 1, 0
    %v244 = vsel %vm180, 1, 0
    %v245 = vsel %vm181, 1, 0
    %v246 = vsel %vm182, 1, 0
    %v247 = vsel %vm183, 1, 0
    %v248 = vsel %vm184, 1, 0
    %v249 = vsel %vm185, 1, 0
    %v250 = vsel %vm186, 1, 0
    %v251 = vsel %vm187, 1, 0
    %v252 = vsel %vm188, 1, 0
    %v253 = vsel %vm189, 1, 0
    %v254 = vsel %vm190, 1, 0
    %v255 = vsel %vm191, 1, 0
    %v256 = vsel %vm192, 1, 0
    %v257 = vsel %vm193, 1, 0
    %v258 = vsel %vm194, 1, 0
    %v259 = vsel %vm195, 1, 0
    %v260 = vsel %vm196, 1, 0
    %v261 = vsel %vm197, 1, 0
    %v262 = vsel %vm198, 1, 0
    %v263 = vsel %vm199, 1, 0
    %v264 = vsel %vm200, 1, 0
    %v265 = vsel %vm201, 1, 0
    %v266 = vsel %vm202, 1, 0
    %v267 = vsel %vm203, 1, 0
    %v268 = vsel %vm204, 1, 0
    %v269 = vsel %vm205, 1, 0
    %v270 = vsel %vm206, 1, 0
    %v271 = vsel %vm207, 1, 0
    %v272 = vsel %vm208, 1, 0
    %v273 = vsel %vm209, 1, 0
    %v274 = vsel %vm210, 1, 0
    %v275 = vsel %vm211, 1, 0
    %v276 = vsel %vm212, 1, 0
    %v277 = vsel %vm213, 1, 0
    %v278 = vsel %vm214, 1, 0
    %v279 = vsel %vm215, 1, 0
    %v280 = vsel %vm216, 1, 0
    %v281 = vsel %vm217, 1, 0
    %v282 = vsel %vm218, 1, 0
    %v283 = vsel %vm219, 1, 0
    %v284 = vsel %vm220, 1, 0
    %v285 = vsel %vm221, 1, 0
    %v286 = vsel %vm222, 1, 0
    %v287 = vsel %vm223, 1, 0
    %v288 = vsel %vm224, 1, 0
    %v289 = vcvt.s32.f32 %v225
    %v290 = vcvt.s32.f32 %v226
    %v291 = vcvt.s32.f32 %v227
    %v292 = vcvt.s32.f32 %v228
    %v293 = vcvt.s32.f32 %v229
    %v294 = vcvt.s32.f32 %v230
    %v295 = vcvt.s32.f32 %v231
    %v296 = vcvt.s32.f32 %v232
    %v297 = vcvt.s32.f32 %v233
    %v298 = vcvt.s32.f32 %v234
    %v299 = vcvt.s32.f32 %v235
    %v300 = vcvt.s32.f32 %v236
    %v301 = vcvt.s32.f32 %v237
    %v302 = vcvt.s32.f32 %v238
    %v303 = vcvt.s32.f32 %v239
    %v304 = vcvt.s32.f32 %v240
    %v305 = vcvt.s32.f32 %v241
    %v306 = vcvt.s32.f32 %v242
    %v307 = vcvt.s32.f32 %v243
    %v308 = vcvt.s32.f32 %v244
    %v309 = vcvt.s32.f32 %v245
    %v310 = vcvt.s32.f32 %v246
    %v311 = vcvt.s32.f32 %v247
    %v312 = vcvt.s32.f32 %v248
    %v313 = vcvt.s32.f32 %v249
    %v314 = vcvt.s32.f32 %v250
    %v315 = vcvt.s32.f32 %v251
    %v316 = vcvt.s32.f32 %v252
    %v317 = vcvt.s32.f32 %v253
    %v318 = vcvt.s32.f32 %v254
    %v319 = vcvt.s32.f32 %v255
    %v320 = vcvt.s32.f32 %v256
    %v321 = vcvt.s32.f32 %v257
    %v322 = vcvt.s32.f32 %v258
    %v323 = vcvt.s32.f32 %v259
    %v324 = vcvt.s32.f32 %v260
    %v325 = vcvt.s32.f32 %v261
    %v326 = vcvt.s32.f32 %v262
    %v327 = vcvt.s32.f32 %v263
    %v328 = vcvt.s32.f32 %v264
    %v329 = vcvt.s32.f32 %v265
    %v330 = vcvt.s32.f32 %v266
    %v331 = vcvt.s32.f32 %v267
    %v332 = vcvt.s32.f32 %v268
    %v333 = vcvt.s32.f32 %v269
    %v334 = vcvt.s32.f32 %v270
    %v335 = vcvt.s32.f32 %v271
    %v336 = vcvt.s32.f32 %v272
    %v337 = vcvt.s32.f32 %v273
    %v338 = vcvt.s32.f32 %v274
    %v339 = vcvt.s32.f32 %v275
    %v340 = vcvt.s32.f32 %v276
    %v341 = vcvt.s32.f32 %v277
    %v342 = vcvt.s32.f32 %v278
    %v343 = vcvt.s32.f32 %v279
    %v344 = vcvt.s32.f32 %v280
    %v345 = vcvt.s32.f32 %v281
    %v346 = vcvt.s32.f32 %v282
    %v347 = vcvt.s32.f32 %v283
    %v348 = vcvt.s32.f32 %v284
    %v349 = vcvt.s32.f32 %v285
    %v350 = vcvt.s32.f32 %v286
    %v351 = vcvt.s32.f32 %v287
    %v352 = vcvt.s32.f32 %v288
    %v353 = vld [vmem:[%s1] sm:$0xff]
    %v354 = vld [vmem:[%s1 + $0x8] sm:$0xff]
    %v355 = vld [vmem:[%s1 + $0x10] sm:$0xff]
    %v356 = vld [vmem:[%s1 + $0x18] sm:$0xff]
    %v357 = vld [vmem:[%s1 + $0x20] sm:$0xff]
    %v358 = vld [vmem:[%s1 + $0x28] sm:$0xff]
    %v359 = vld [vmem:[%s1 + $0x30] sm:$0xff]
    %v360 = vld [vmem:[%s1 + $0x38] sm:$0xff]
    %v361 = vld [vmem:[%s1 + $0x40] sm:$0xff]
    %v362 = vld [vmem:[%s1 + $0x48] sm:$0xff]
    %v363 = vld [vmem:[%s1 + $0x50] sm:$0xff]
    %v364 = vld [vmem:[%s1 + $0x58] sm:$0xff]
    %v365 = vld [vmem:[%s1 + $0x60] sm:$0xff]
    %v366 = vld [vmem:[%s1 + $0x68] sm:$0xff]
    %v367 = vld [vmem:[%s1 + $0x70] sm:$0xff]
    %v368 = vld [vmem:[%s1 + $0x78] sm:$0xff]
    %v369 = vld [vmem:[%s1 + $0x80] sm:$0xff]
    %v370 = vld [vmem:[%s1 + $0x88] sm:$0xff]
    %v371 = vld [vmem:[%s1 + $0x90] sm:$0xff]
    %v372 = vld [vmem:[%s1 + $0x98] sm:$0xff]
    %v373 = vld [vmem:[%s1 + $0xa0] sm:$0xff]
    %v374 = vld [vmem:[%s1 + $0xa8] sm:$0xff]
    %v375 = vld [vmem:[%s1 + $0xb0] sm:$0xff]
    %v376 = vld [vmem:[%s1 + $0xb8] sm:$0xff]
    %v377 = vld [vmem:[%s1 + $0xc0] sm:$0xff]
    %v378 = vld [vmem:[%s1 + $0xc8] sm:$0xff]
    %v379 = vld [vmem:[%s1 + $0xd0] sm:$0xff]
    %v380 = vld [vmem:[%s1 + $0xd8] sm:$0xff]
    %v381 = vld [vmem:[%s1 + $0xe0] sm:$0xff]
    %v382 = vld [vmem:[%s1 + $0xe8] sm:$0xff]
    %v383 = vld [vmem:[%s1 + $0xf0] sm:$0xff]
    %v384 = vld [vmem:[%s1 + $0xf8] sm:$0xff]
    %385 = vset.pattern.permute.xlu0 0
    %386 = vperm.xlu0 %385, %v353
    %v387 = vpop.permute.xlu0 %386
    %388 = vset.pattern.permute.xlu0 0
    %389 = vperm.xlu0 %388, %v354
    %v390 = vpop.permute.xlu0 %389
    %391 = vset.pattern.permute.xlu0 0
    %392 = vperm.xlu0 %391, %v355
    %v393 = vpop.permute.xlu0 %392
    %394 = vset.pattern.permute.xlu0 0
    %395 = vperm.xlu0 %394, %v356
    %v396 = vpop.permute.xlu0 %395
    %397 = vset.pattern.permute.xlu0 0
    %398 = vperm.xlu0 %397, %v357
    %v399 = vpop.permute.xlu0 %398
    %400 = vset.pattern.permute.xlu0 0
    %401 = vperm.xlu0 %400, %v358
    %v402 = vpop.permute.xlu0 %401
    %403 = vset.pattern.permute.xlu0 0
    %404 = vperm.xlu0 %403, %v359
    %v405 = vpop.permute.xlu0 %404
    %406 = vset.pattern.permute.xlu0 0
    %407 = vperm.xlu0 %406, %v360
    %v408 = vpop.permute.xlu0 %407
    %409 = vset.pattern.permute.xlu0 0
    %410 = vperm.xlu0 %409, %v361
    %v411 = vpop.permute.xlu0 %410
    %412 = vset.pattern.permute.xlu0 0
    %413 = vperm.xlu0 %412, %v362
    %v414 = vpop.permute.xlu0 %413
    %415 = vset.pattern.permute.xlu0 0
    %416 = vperm.xlu0 %415, %v363
    %v417 = vpop.permute.xlu0 %416
    %418 = vset.pattern.permute.xlu0 0
    %419 = vperm.xlu0 %418, %v364
    %v420 = vpop.permute.xlu0 %419
    %421 = vset.pattern.permute.xlu0 0
    %422 = vperm.xlu0 %421, %v365
    %v423 = vpop.permute.xlu0 %422
    %424 = vset.pattern.permute.xlu0 0
    %425 = vperm.xlu0 %424, %v366
    %v426 = vpop.permute.xlu0 %425
    %427 = vset.pattern.permute.xlu0 0
    %428 = vperm.xlu0 %427, %v367
    %v429 = vpop.permute.xlu0 %428
    %430 = vset.pattern.permute.xlu0 0
    %431 = vperm.xlu0 %430, %v368
    %v432 = vpop.permute.xlu0 %431
    %433 = vset.pattern.permute.xlu0 0
    %434 = vperm.xlu0 %433, %v369
    %v435 = vpop.permute.xlu0 %434
    %436 = vset.pattern.permute.xlu0 0
    %437 = vperm.xlu0 %436, %v370
    %v438 = vpop.permute.xlu0 %437
    %439 = vset.pattern.permute.xlu0 0
    %440 = vperm.xlu0 %439, %v371
    %v441 = vpop.permute.xlu0 %440
    %442 = vset.pattern.permute.xlu0 0
    %443 = vperm.xlu0 %442, %v372
    %v444 = vpop.permute.xlu0 %443
    %445 = vset.pattern.permute.xlu0 0
    %446 = vperm.xlu0 %445, %v373
    %v447 = vpop.permute.xlu0 %446
    %448 = vset.pattern.permute.xlu0 0
    %449 = vperm.xlu0 %448, %v374
    %v450 = vpop.permute.xlu0 %449
    %451 = vset.pattern.permute.xlu0 0
    %452 = vperm.xlu0 %451, %v375
    %v453 = vpop.permute.xlu0 %452
    %454 = vset.pattern.permute.xlu0 0
    %455 = vperm.xlu0 %454, %v376
    %v456 = vpop.permute.xlu0 %455
    %457 = vset.pattern.permute.xlu0 0
    %458 = vperm.xlu0 %457, %v377
    %v459 = vpop.permute.xlu0 %458
    %460 = vset.pattern.permute.xlu0 0
    %461 = vperm.xlu0 %460, %v378
    %v462 = vpop.permute.xlu0 %461
    %463 = vset.pattern.permute.xlu0 0
    %464 = vperm.xlu0 %463, %v379
    %v465 = vpop.permute.xlu0 %464
    %466 = vset.pattern.permute.xlu0 0
    %467 = vperm.xlu0 %466, %v380
    %v468 = vpop.permute.xlu0 %467
    %469 = vset.pattern.permute.xlu0 0
    %470 = vperm.xlu0 %469, %v381
    %v471 = vpop.permute.xlu0 %470
    %472 = vset.pattern.permute.xlu0 0
    %473 = vperm.xlu0 %472, %v382
    %v474 = vpop.permute.xlu0 %473
    %475 = vset.pattern.permute.xlu0 0
    %476 = vperm.xlu0 %475, %v383
    %v477 = vpop.permute.xlu0 %476
    %478 = vset.pattern.permute.xlu0 0
    %479 = vperm.xlu0 %478, %v384
    %v480 = vpop.permute.xlu0 %479
    %vm481 = vcmp.eq.s32.totalorder %v387, %v31
    %vm482 = vcmp.eq.s32.totalorder %v387, %v32
    %vm483 = vcmp.eq.s32.totalorder %v390, %v31
    %vm484 = vcmp.eq.s32.totalorder %v390, %v32
    %vm485 = vcmp.eq.s32.totalorder %v393, %v31
    %vm486 = vcmp.eq.s32.totalorder %v393, %v32
    %vm487 = vcmp.eq.s32.totalorder %v396, %v31
    %vm488 = vcmp.eq.s32.totalorder %v396, %v32
    %vm489 = vcmp.eq.s32.totalorder %v399, %v31
    %vm490 = vcmp.eq.s32.totalorder %v399, %v32
    %vm491 = vcmp.eq.s32.totalorder %v402, %v31
    %vm492 = vcmp.eq.s32.totalorder %v402, %v32
    %vm493 = vcmp.eq.s32.totalorder %v405, %v31
    %vm494 = vcmp.eq.s32.totalorder %v405, %v32
    %vm495 = vcmp.eq.s32.totalorder %v408, %v31
    %vm496 = vcmp.eq.s32.totalorder %v408, %v32
    %vm497 = vcmp.eq.s32.totalorder %v411, %v31
    %vm498 = vcmp.eq.s32.totalorder %v411, %v32
    %vm499 = vcmp.eq.s32.totalorder %v414, %v31
    %vm500 = vcmp.eq.s32.totalorder %v414, %v32
    %vm501 = vcmp.eq.s32.totalorder %v417, %v31
    %vm502 = vcmp.eq.s32.totalorder %v417, %v32
    %vm503 = vcmp.eq.s32.totalorder %v420, %v31
    %vm504 = vcmp.eq.s32.totalorder %v420, %v32
    %vm505 = vcmp.eq.s32.totalorder %v423, %v31
    %vm506 = vcmp.eq.s32.totalorder %v423, %v32
    %vm507 = vcmp.eq.s32.totalorder %v426, %v31
    %vm508 = vcmp.eq.s32.totalorder %v426, %v32
    %vm509 = vcmp.eq.s32.totalorder %v429, %v31
    %vm510 = vcmp.eq.s32.totalorder %v429, %v32
    %vm511 = vcmp.eq.s32.totalorder %v432, %v31
    %vm512 = vcmp.eq.s32.totalorder %v432, %v32
    %vm513 = vcmp.eq.s32.totalorder %v435, %v31
    %vm514 = vcmp.eq.s32.totalorder %v435, %v32
    %vm515 = vcmp.eq.s32.totalorder %v438, %v31
    %vm516 = vcmp.eq.s32.totalorder %v438, %v32
    %vm517 = vcmp.eq.s32.totalorder %v441, %v31
    %vm518 = vcmp.eq.s32.totalorder %v441, %v32
    %vm519 = vcmp.eq.s32.totalorder %v444, %v31
    %vm520 = vcmp.eq.s32.totalorder %v444, %v32
    %vm521 = vcmp.eq.s32.totalorder %v447, %v31
    %vm522 = vcmp.eq.s32.totalorder %v447, %v32
    %vm523 = vcmp.eq.s32.totalorder %v450, %v31
    %vm524 = vcmp.eq.s32.totalorder %v450, %v32
    %vm525 = vcmp.eq.s32.totalorder %v453, %v31
    %vm526 = vcmp.eq.s32.totalorder %v453, %v32
    %vm527 = vcmp.eq.s32.totalorder %v456, %v31
    %vm528 = vcmp.eq.s32.totalorder %v456, %v32
    %vm529 = vcmp.eq.s32.totalorder %v459, %v31
    %vm530 = vcmp.eq.s32.totalorder %v459, %v32
    %vm531 = vcmp.eq.s32.totalorder %v462, %v31
    %vm532 = vcmp.eq.s32.totalorder %v462, %v32
    %vm533 = vcmp.eq.s32.totalorder %v465, %v31
    %vm534 = vcmp.eq.s32.totalorder %v465, %v32
    %vm535 = vcmp.eq.s32.totalorder %v468, %v31
    %vm536 = vcmp.eq.s32.totalorder %v468, %v32
    %vm537 = vcmp.eq.s32.totalorder %v471, %v31
    %vm538 = vcmp.eq.s32.totalorder %v471, %v32
    %vm539 = vcmp.eq.s32.totalorder %v474, %v31
    %vm540 = vcmp.eq.s32.totalorder %v474, %v32
    %vm541 = vcmp.eq.s32.totalorder %v477, %v31
    %vm542 = vcmp.eq.s32.totalorder %v477, %v32
    %vm543 = vcmp.eq.s32.totalorder %v480, %v31
    %vm544 = vcmp.eq.s32.totalorder %v480, %v32
    %v545 = vsel %vm481, 1, 0
    %v546 = vsel %vm482, 1, 0
    %v547 = vsel %vm483, 1, 0
    %v548 = vsel %vm484, 1, 0
    %v549 = vsel %vm485, 1, 0
    %v550 = vsel %vm486, 1, 0
    %v551 = vsel %vm487, 1, 0
    %v552 = vsel %vm488, 1, 0
    %v553 = vsel %vm489, 1, 0
    %v554 = vsel %vm490, 1, 0
    %v555 = vsel %vm491, 1, 0
    %v556 = vsel %vm492, 1, 0
    %v557 = vsel %vm493, 1, 0
    %v558 = vsel %vm494, 1, 0
    %v559 = vsel %vm495, 1, 0
    %v560 = vsel %vm496, 1, 0
    %v561 = vsel %vm497, 1, 0
    %v562 = vsel %vm498, 1, 0
    %v563 = vsel %vm499, 1, 0
    %v564 = vsel %vm500, 1, 0
    %v565 = vsel %vm501, 1, 0
    %v566 = vsel %vm502, 1, 0
    %v567 = vsel %vm503, 1, 0
    %v568 = vsel %vm504, 1, 0
    %v569 = vsel %vm505, 1, 0
    %v570 = vsel %vm506, 1, 0
    %v571 = vsel %vm507, 1, 0
    %v572 = vsel %vm508, 1, 0
    %v573 = vsel %vm509, 1, 0
    %v574 = vsel %vm510, 1, 0
    %v575 = vsel %vm511, 1, 0
    %v576 = vsel %vm512, 1, 0
    %v577 = vsel %vm513, 1, 0
    %v578 = vsel %vm514, 1, 0
    %v579 = vsel %vm515, 1, 0
    %v580 = vsel %vm516, 1, 0
    %v581 = vsel %vm517, 1, 0
    %v582 = vsel %vm518, 1, 0
    %v583 = vsel %vm519, 1, 0
    %v584 = vsel %vm520, 1, 0
    %v585 = vsel %vm521, 1, 0
    %v586 = vsel %vm522, 1, 0
    %v587 = vsel %vm523, 1, 0
    %v588 = vsel %vm524, 1, 0
    %v589 = vsel %vm525, 1, 0
    %v590 = vsel %vm526, 1, 0
    %v591 = vsel %vm527, 1, 0
    %v592 = vsel %vm528, 1, 0
    %v593 = vsel %vm529, 1, 0
    %v594 = vsel %vm530, 1, 0
    %v595 = vsel %vm531, 1, 0
    %v596 = vsel %vm532, 1, 0
    %v597 = vsel %vm533, 1, 0
    %v598 = vsel %vm534, 1, 0
    %v599 = vsel %vm535, 1, 0
    %v600 = vsel %vm536, 1, 0
    %v601 = vsel %vm537, 1, 0
    %v602 = vsel %vm538, 1, 0
    %v603 = vsel %vm539, 1, 0
    %v604 = vsel %vm540, 1, 0
    %v605 = vsel %vm541, 1, 0
    %v606 = vsel %vm542, 1, 0
    %v607 = vsel %vm543, 1, 0
    %v608 = vsel %vm544, 1, 0
    %v609 = vcvt.s32.f32 %v545
    %v610 = vcvt.s32.f32 %v546
    %v611 = vcvt.s32.f32 %v547
    %v612 = vcvt.s32.f32 %v548
    %v613 = vcvt.s32.f32 %v549
    %v614 = vcvt.s32.f32 %v550
    %v615 = vcvt.s32.f32 %v551
    %v616 = vcvt.s32.f32 %v552
    %v617 = vcvt.s32.f32 %v553
    %v618 = vcvt.s32.f32 %v554
    %v619 = vcvt.s32.f32 %v555
    %v620 = vcvt.s32.f32 %v556
    %v621 = vcvt.s32.f32 %v557
    %v622 = vcvt.s32.f32 %v558
    %v623 = vcvt.s32.f32 %v559
    %v624 = vcvt.s32.f32 %v560
    %v625 = vcvt.s32.f32 %v561
    %v626 = vcvt.s32.f32 %v562
    %v627 = vcvt.s32.f32 %v563
    %v628 = vcvt.s32.f32 %v564
    %v629 = vcvt.s32.f32 %v565
    %v630 = vcvt.s32.f32 %v566
    %v631 = vcvt.s32.f32 %v567
    %v632 = vcvt.s32.f32 %v568
    %v633 = vcvt.s32.f32 %v569
    %v634 = vcvt.s32.f32 %v570
    %v635 = vcvt.s32.f32 %v571
    %v636 = vcvt.s32.f32 %v572
    %v637 = vcvt.s32.f32 %v573
    %v638 = vcvt.s32.f32 %v574
    %v639 = vcvt.s32.f32 %v575
    %v640 = vcvt.s32.f32 %v576
    %v641 = vcvt.s32.f32 %v577
    %v642 = vcvt.s32.f32 %v578
    %v643 = vcvt.s32.f32 %v579
    %v644 = vcvt.s32.f32 %v580
    %v645 = vcvt.s32.f32 %v581
    %v646 = vcvt.s32.f32 %v582
    %v647 = vcvt.s32.f32 %v583
    %v648 = vcvt.s32.f32 %v584
    %v649 = vcvt.s32.f32 %v585
    %v650 = vcvt.s32.f32 %v586
    %v651 = vcvt.s32.f32 %v587
    %v652 = vcvt.s32.f32 %v588
    %v653 = vcvt.s32.f32 %v589
    %v654 = vcvt.s32.f32 %v590
    %v655 = vcvt.s32.f32 %v591
    %v656 = vcvt.s32.f32 %v592
    %v657 = vcvt.s32.f32 %v593
    %v658 = vcvt.s32.f32 %v594
    %v659 = vcvt.s32.f32 %v595
    %v660 = vcvt.s32.f32 %v596
    %v661 = vcvt.s32.f32 %v597
    %v662 = vcvt.s32.f32 %v598
    %v663 = vcvt.s32.f32 %v599
    %v664 = vcvt.s32.f32 %v600
    %v665 = vcvt.s32.f32 %v601
    %v666 = vcvt.s32.f32 %v602
    %v667 = vcvt.s32.f32 %v603
    %v668 = vcvt.s32.f32 %v604
    %v669 = vcvt.s32.f32 %v605
    %v670 = vcvt.s32.f32 %v606
    %v671 = vcvt.s32.f32 %v607
    %v672 = vcvt.s32.f32 %v608
    %v673 = vadd.f32 %v289, %v609
    %v674 = vadd.f32 %v290, %v610
    %v675 = vadd.f32 %v291, %v611
    %v676 = vadd.f32 %v292, %v612
    %v677 = vadd.f32 %v293, %v613
    %v678 = vadd.f32 %v294, %v614
    %v679 = vadd.f32 %v295, %v615
    %v680 = vadd.f32 %v296, %v616
    %v681 = vadd.f32 %v297, %v617
    %v682 = vadd.f32 %v298, %v618
    %v683 = vadd.f32 %v299, %v619
    %v684 = vadd.f32 %v300, %v620
    %v685 = vadd.f32 %v301, %v621
    %v686 = vadd.f32 %v302, %v622
    %v687 = vadd.f32 %v303, %v623
    %v688 = vadd.f32 %v304, %v624
    %v689 = vadd.f32 %v305, %v625
    %v690 = vadd.f32 %v306, %v626
    %v691 = vadd.f32 %v307, %v627
    %v692 = vadd.f32 %v308, %v628
    %v693 = vadd.f32 %v309, %v629
    %v694 = vadd.f32 %v310, %v630
    %v695 = vadd.f32 %v311, %v631
    %v696 = vadd.f32 %v312, %v632
    %v697 = vadd.f32 %v313, %v633
    %v698 = vadd.f32 %v314, %v634
    %v699 = vadd.f32 %v315, %v635
    %v700 = vadd.f32 %v316, %v636
    %v701 = vadd.f32 %v317, %v637
    %v702 = vadd.f32 %v318, %v638
    %v703 = vadd.f32 %v319, %v639
    %v704 = vadd.f32 %v320, %v640
    %v705 = vadd.f32 %v321, %v641
    %v706 = vadd.f32 %v322, %v642
    %v707 = vadd.f32 %v323, %v643
    %v708 = vadd.f32 %v324, %v644
    %v709 = vadd.f32 %v325, %v645
    %v710 = vadd.f32 %v326, %v646
    %v711 = vadd.f32 %v327, %v647
    %v712 = vadd.f32 %v328, %v648
    %v713 = vadd.f32 %v329, %v649
    %v714 = vadd.f32 %v330, %v650
    %v715 = vadd.f32 %v331, %v651
    %v716 = vadd.f32 %v332, %v652
    %v717 = vadd.f32 %v333, %v653
    %v718 = vadd.f32 %v334, %v654
    %v719 = vadd.f32 %v335, %v655
    %v720 = vadd.f32 %v336, %v656
    %v721 = vadd.f32 %v337, %v657
    %v722 = vadd.f32 %v338, %v658
    %v723 = vadd.f32 %v339, %v659
    %v724 = vadd.f32 %v340, %v660
    %v725 = vadd.f32 %v341, %v661
    %v726 = vadd.f32 %v342, %v662
    %v727 = vadd.f32 %v343, %v663
    %v728 = vadd.f32 %v344, %v664
    %v729 = vadd.f32 %v345, %v665
    %v730 = vadd.f32 %v346, %v666
    %v731 = vadd.f32 %v347, %v667
    %v732 = vadd.f32 %v348, %v668
    %v733 = vadd.f32 %v349, %v669
    %v734 = vadd.f32 %v350, %v670
    %v735 = vadd.f32 %v351, %v671
    %v736 = vadd.f32 %v352, %v672
    %v737 = vld [vmem:[%s2] sm:$0xff]
    %v738 = vld [vmem:[%s2 + $0x8] sm:$0xff]
    %v739 = vld [vmem:[%s2 + $0x10] sm:$0xff]
    %v740 = vld [vmem:[%s2 + $0x18] sm:$0xff]
    %v741 = vld [vmem:[%s2 + $0x20] sm:$0xff]
    %v742 = vld [vmem:[%s2 + $0x28] sm:$0xff]
    %v743 = vld [vmem:[%s2 + $0x30] sm:$0xff]
    %v744 = vld [vmem:[%s2 + $0x38] sm:$0xff]
    %v745 = vld [vmem:[%s2 + $0x40] sm:$0xff]
    %v746 = vld [vmem:[%s2 + $0x48] sm:$0xff]
    %v747 = vld [vmem:[%s2 + $0x50] sm:$0xff]
    %v748 = vld [vmem:[%s2 + $0x58] sm:$0xff]
    %v749 = vld [vmem:[%s2 + $0x60] sm:$0xff]
    %v750 = vld [vmem:[%s2 + $0x68] sm:$0xff]
    %v751 = vld [vmem:[%s2 + $0x70] sm:$0xff]
    %v752 = vld [vmem:[%s2 + $0x78] sm:$0xff]
    %v753 = vld [vmem:[%s2 + $0x80] sm:$0xff]
    %v754 = vld [vmem:[%s2 + $0x88] sm:$0xff]
    %v755 = vld [vmem:[%s2 + $0x90] sm:$0xff]
    %v756 = vld [vmem:[%s2 + $0x98] sm:$0xff]
    %v757 = vld [vmem:[%s2 + $0xa0] sm:$0xff]
    %v758 = vld [vmem:[%s2 + $0xa8] sm:$0xff]
    %v759 = vld [vmem:[%s2 + $0xb0] sm:$0xff]
    %v760 = vld [vmem:[%s2 + $0xb8] sm:$0xff]
    %v761 = vld [vmem:[%s2 + $0xc0] sm:$0xff]
    %v762 = vld [vmem:[%s2 + $0xc8] sm:$0xff]
    %v763 = vld [vmem:[%s2 + $0xd0] sm:$0xff]
    %v764 = vld [vmem:[%s2 + $0xd8] sm:$0xff]
    %v765 = vld [vmem:[%s2 + $0xe0] sm:$0xff]
    %v766 = vld [vmem:[%s2 + $0xe8] sm:$0xff]
    %v767 = vld [vmem:[%s2 + $0xf0] sm:$0xff]
    %v768 = vld [vmem:[%s2 + $0xf8] sm:$0xff]
    %769 = vset.pattern.permute.xlu0 0
    %770 = vperm.xlu0 %769, %v737
    %v771 = vpop.permute.xlu0 %770
    %772 = vset.pattern.permute.xlu0 0
    %773 = vperm.xlu0 %772, %v738
    %v774 = vpop.permute.xlu0 %773
    %775 = vset.pattern.permute.xlu0 0
    %776 = vperm.xlu0 %775, %v739
    %v777 = vpop.permute.xlu0 %776
    %778 = vset.pattern.permute.xlu0 0
    %779 = vperm.xlu0 %778, %v740
    %v780 = vpop.permute.xlu0 %779
    %781 = vset.pattern.permute.xlu0 0
    %782 = vperm.xlu0 %781, %v741
    %v783 = vpop.permute.xlu0 %782
    %784 = vset.pattern.permute.xlu0 0
    %785 = vperm.xlu0 %784, %v742
    %v786 = vpop.permute.xlu0 %785
    %787 = vset.pattern.permute.xlu0 0
    %788 = vperm.xlu0 %787, %v743
    %v789 = vpop.permute.xlu0 %788
    %790 = vset.pattern.permute.xlu0 0
    %791 = vperm.xlu0 %790, %v744
    %v792 = vpop.permute.xlu0 %791
    %793 = vset.pattern.permute.xlu0 0
    %794 = vperm.xlu0 %793, %v745
    %v795 = vpop.permute.xlu0 %794
    %796 = vset.pattern.permute.xlu0 0
    %797 = vperm.xlu0 %796, %v746
    %v798 = vpop.permute.xlu0 %797
    %799 = vset.pattern.permute.xlu0 0
    %800 = vperm.xlu0 %799, %v747
    %v801 = vpop.permute.xlu0 %800
    %802 = vset.pattern.permute.xlu0 0
    %803 = vperm.xlu0 %802, %v748
    %v804 = vpop.permute.xlu0 %803
    %805 = vset.pattern.permute.xlu0 0
    %806 = vperm.xlu0 %805, %v749
    %v807 = vpop.permute.xlu0 %806
    %808 = vset.pattern.permute.xlu0 0
    %809 = vperm.xlu0 %808, %v750
    %v810 = vpop.permute.xlu0 %809
    %811 = vset.pattern.permute.xlu0 0
    %812 = vperm.xlu0 %811, %v751
    %v813 = vpop.permute.xlu0 %812
    %814 = vset.pattern.permute.xlu0 0
    %815 = vperm.xlu0 %814, %v752
    %v816 = vpop.permute.xlu0 %815
    %817 = vset.pattern.permute.xlu0 0
    %818 = vperm.xlu0 %817, %v753
    %v819 = vpop.permute.xlu0 %818
    %820 = vset.pattern.permute.xlu0 0
    %821 = vperm.xlu0 %820, %v754
    %v822 = vpop.permute.xlu0 %821
    %823 = vset.pattern.permute.xlu0 0
    %824 = vperm.xlu0 %823, %v755
    %v825 = vpop.permute.xlu0 %824
    %826 = vset.pattern.permute.xlu0 0
    %827 = vperm.xlu0 %826, %v756
    %v828 = vpop.permute.xlu0 %827
    %829 = vset.pattern.permute.xlu0 0
    %830 = vperm.xlu0 %829, %v757
    %v831 = vpop.permute.xlu0 %830
    %832 = vset.pattern.permute.xlu0 0
    %833 = vperm.xlu0 %832, %v758
    %v834 = vpop.permute.xlu0 %833
    %835 = vset.pattern.permute.xlu0 0
    %836 = vperm.xlu0 %835, %v759
    %v837 = vpop.permute.xlu0 %836
    %838 = vset.pattern.permute.xlu0 0
    %839 = vperm.xlu0 %838, %v760
    %v840 = vpop.permute.xlu0 %839
    %841 = vset.pattern.permute.xlu0 0
    %842 = vperm.xlu0 %841, %v761
    %v843 = vpop.permute.xlu0 %842
    %844 = vset.pattern.permute.xlu0 0
    %845 = vperm.xlu0 %844, %v762
    %v846 = vpop.permute.xlu0 %845
    %847 = vset.pattern.permute.xlu0 0
    %848 = vperm.xlu0 %847, %v763
    %v849 = vpop.permute.xlu0 %848
    %850 = vset.pattern.permute.xlu0 0
    %851 = vperm.xlu0 %850, %v764
    %v852 = vpop.permute.xlu0 %851
    %853 = vset.pattern.permute.xlu0 0
    %854 = vperm.xlu0 %853, %v765
    %v855 = vpop.permute.xlu0 %854
    %856 = vset.pattern.permute.xlu0 0
    %857 = vperm.xlu0 %856, %v766
    %v858 = vpop.permute.xlu0 %857
    %859 = vset.pattern.permute.xlu0 0
    %860 = vperm.xlu0 %859, %v767
    %v861 = vpop.permute.xlu0 %860
    %862 = vset.pattern.permute.xlu0 0
    %863 = vperm.xlu0 %862, %v768
    %v864 = vpop.permute.xlu0 %863
    %vm865 = vcmp.eq.s32.totalorder %v771, %v31
    %vm866 = vcmp.eq.s32.totalorder %v771, %v32
    %vm867 = vcmp.eq.s32.totalorder %v774, %v31
    %vm868 = vcmp.eq.s32.totalorder %v774, %v32
    %vm869 = vcmp.eq.s32.totalorder %v777, %v31
    %vm870 = vcmp.eq.s32.totalorder %v777, %v32
    %vm871 = vcmp.eq.s32.totalorder %v780, %v31
    %vm872 = vcmp.eq.s32.totalorder %v780, %v32
    %vm873 = vcmp.eq.s32.totalorder %v783, %v31
    %vm874 = vcmp.eq.s32.totalorder %v783, %v32
    %vm875 = vcmp.eq.s32.totalorder %v786, %v31
    %vm876 = vcmp.eq.s32.totalorder %v786, %v32
    %vm877 = vcmp.eq.s32.totalorder %v789, %v31
    %vm878 = vcmp.eq.s32.totalorder %v789, %v32
    %vm879 = vcmp.eq.s32.totalorder %v792, %v31
    %vm880 = vcmp.eq.s32.totalorder %v792, %v32
    %vm881 = vcmp.eq.s32.totalorder %v795, %v31
    %vm882 = vcmp.eq.s32.totalorder %v795, %v32
    %vm883 = vcmp.eq.s32.totalorder %v798, %v31
    %vm884 = vcmp.eq.s32.totalorder %v798, %v32
    %vm885 = vcmp.eq.s32.totalorder %v801, %v31
    %vm886 = vcmp.eq.s32.totalorder %v801, %v32
    %vm887 = vcmp.eq.s32.totalorder %v804, %v31
    %vm888 = vcmp.eq.s32.totalorder %v804, %v32
    %vm889 = vcmp.eq.s32.totalorder %v807, %v31
    %vm890 = vcmp.eq.s32.totalorder %v807, %v32
    %vm891 = vcmp.eq.s32.totalorder %v810, %v31
    %vm892 = vcmp.eq.s32.totalorder %v810, %v32
    %vm893 = vcmp.eq.s32.totalorder %v813, %v31
    %vm894 = vcmp.eq.s32.totalorder %v813, %v32
    %vm895 = vcmp.eq.s32.totalorder %v816, %v31
    %vm896 = vcmp.eq.s32.totalorder %v816, %v32
    %vm897 = vcmp.eq.s32.totalorder %v819, %v31
    %vm898 = vcmp.eq.s32.totalorder %v819, %v32
    %vm899 = vcmp.eq.s32.totalorder %v822, %v31
    %vm900 = vcmp.eq.s32.totalorder %v822, %v32
    %vm901 = vcmp.eq.s32.totalorder %v825, %v31
    %vm902 = vcmp.eq.s32.totalorder %v825, %v32
    %vm903 = vcmp.eq.s32.totalorder %v828, %v31
    %vm904 = vcmp.eq.s32.totalorder %v828, %v32
    %vm905 = vcmp.eq.s32.totalorder %v831, %v31
    %vm906 = vcmp.eq.s32.totalorder %v831, %v32
    %vm907 = vcmp.eq.s32.totalorder %v834, %v31
    %vm908 = vcmp.eq.s32.totalorder %v834, %v32
    %vm909 = vcmp.eq.s32.totalorder %v837, %v31
    %vm910 = vcmp.eq.s32.totalorder %v837, %v32
    %vm911 = vcmp.eq.s32.totalorder %v840, %v31
    %vm912 = vcmp.eq.s32.totalorder %v840, %v32
    %vm913 = vcmp.eq.s32.totalorder %v843, %v31
    %vm914 = vcmp.eq.s32.totalorder %v843, %v32
    %vm915 = vcmp.eq.s32.totalorder %v846, %v31
    %vm916 = vcmp.eq.s32.totalorder %v846, %v32
    %vm917 = vcmp.eq.s32.totalorder %v849, %v31
    %vm918 = vcmp.eq.s32.totalorder %v849, %v32
    %vm919 = vcmp.eq.s32.totalorder %v852, %v31
    %vm920 = vcmp.eq.s32.totalorder %v852, %v32
    %vm921 = vcmp.eq.s32.totalorder %v855, %v31
    %vm922 = vcmp.eq.s32.totalorder %v855, %v32
    %vm923 = vcmp.eq.s32.totalorder %v858, %v31
    %vm924 = vcmp.eq.s32.totalorder %v858, %v32
    %vm925 = vcmp.eq.s32.totalorder %v861, %v31
    %vm926 = vcmp.eq.s32.totalorder %v861, %v32
    %vm927 = vcmp.eq.s32.totalorder %v864, %v31
    %vm928 = vcmp.eq.s32.totalorder %v864, %v32
    %v929 = vsel %vm865, 1, 0
    %v930 = vsel %vm866, 1, 0
    %v931 = vsel %vm867, 1, 0
    %v932 = vsel %vm868, 1, 0
    %v933 = vsel %vm869, 1, 0
    %v934 = vsel %vm870, 1, 0
    %v935 = vsel %vm871, 1, 0
    %v936 = vsel %vm872, 1, 0
    %v937 = vsel %vm873, 1, 0
    %v938 = vsel %vm874, 1, 0
    %v939 = vsel %vm875, 1, 0
    %v940 = vsel %vm876, 1, 0
    %v941 = vsel %vm877, 1, 0
    %v942 = vsel %vm878, 1, 0
    %v943 = vsel %vm879, 1, 0
    %v944 = vsel %vm880, 1, 0
    %v945 = vsel %vm881, 1, 0
    %v946 = vsel %vm882, 1, 0
    %v947 = vsel %vm883, 1, 0
    %v948 = vsel %vm884, 1, 0
    %v949 = vsel %vm885, 1, 0
    %v950 = vsel %vm886, 1, 0
    %v951 = vsel %vm887, 1, 0
    %v952 = vsel %vm888, 1, 0
    %v953 = vsel %vm889, 1, 0
    %v954 = vsel %vm890, 1, 0
    %v955 = vsel %vm891, 1, 0
    %v956 = vsel %vm892, 1, 0
    %v957 = vsel %vm893, 1, 0
    %v958 = vsel %vm894, 1, 0
    %v959 = vsel %vm895, 1, 0
    %v960 = vsel %vm896, 1, 0
    %v961 = vsel %vm897, 1, 0
    %v962 = vsel %vm898, 1, 0
    %v963 = vsel %vm899, 1, 0
    %v964 = vsel %vm900, 1, 0
    %v965 = vsel %vm901, 1, 0
    %v966 = vsel %vm902, 1, 0
    %v967 = vsel %vm903, 1, 0
    %v968 = vsel %vm904, 1, 0
    %v969 = vsel %vm905, 1, 0
    %v970 = vsel %vm906, 1, 0
    %v971 = vsel %vm907, 1, 0
    %v972 = vsel %vm908, 1, 0
    %v973 = vsel %vm909, 1, 0
    %v974 = vsel %vm910, 1, 0
    %v975 = vsel %vm911, 1, 0
    %v976 = vsel %vm912, 1, 0
    %v977 = vsel %vm913, 1, 0
    %v978 = vsel %vm914, 1, 0
    %v979 = vsel %vm915, 1, 0
    %v980 = vsel %vm916, 1, 0
    %v981 = vsel %vm917, 1, 0
    %v982 = vsel %vm918, 1, 0
    %v983 = vsel %vm919, 1, 0
    %v984 = vsel %vm920, 1, 0
    %v985 = vsel %vm921, 1, 0
    %v986 = vsel %vm922, 1, 0
    %v987 = vsel %vm923, 1, 0
    %v988 = vsel %vm924, 1, 0
    %v989 = vsel %vm925, 1, 0
    %v990 = vsel %vm926, 1, 0
    %v991 = vsel %vm927, 1, 0
    %v992 = vsel %vm928, 1, 0
    %v993 = vcvt.s32.f32 %v929
    %v994 = vcvt.s32.f32 %v930
    %v995 = vcvt.s32.f32 %v931
    %v996 = vcvt.s32.f32 %v932
    %v997 = vcvt.s32.f32 %v933
    %v998 = vcvt.s32.f32 %v934
    %v999 = vcvt.s32.f32 %v935
    %v1000 = vcvt.s32.f32 %v936
    %v1001 = vcvt.s32.f32 %v937
    %v1002 = vcvt.s32.f32 %v938
    %v1003 = vcvt.s32.f32 %v939
    %v1004 = vcvt.s32.f32 %v940
    %v1005 = vcvt.s32.f32 %v941
    %v1006 = vcvt.s32.f32 %v942
    %v1007 = vcvt.s32.f32 %v943
    %v1008 = vcvt.s32.f32 %v944
    %v1009 = vcvt.s32.f32 %v945
    %v1010 = vcvt.s32.f32 %v946
    %v1011 = vcvt.s32.f32 %v947
    %v1012 = vcvt.s32.f32 %v948
    %v1013 = vcvt.s32.f32 %v949
    %v1014 = vcvt.s32.f32 %v950
    %v1015 = vcvt.s32.f32 %v951
    %v1016 = vcvt.s32.f32 %v952
    %v1017 = vcvt.s32.f32 %v953
    %v1018 = vcvt.s32.f32 %v954
    %v1019 = vcvt.s32.f32 %v955
    %v1020 = vcvt.s32.f32 %v956
    %v1021 = vcvt.s32.f32 %v957
    %v1022 = vcvt.s32.f32 %v958
    %v1023 = vcvt.s32.f32 %v959
    %v1024 = vcvt.s32.f32 %v960
    %v1025 = vcvt.s32.f32 %v961
    %v1026 = vcvt.s32.f32 %v962
    %v1027 = vcvt.s32.f32 %v963
    %v1028 = vcvt.s32.f32 %v964
    %v1029 = vcvt.s32.f32 %v965
    %v1030 = vcvt.s32.f32 %v966
    %v1031 = vcvt.s32.f32 %v967
    %v1032 = vcvt.s32.f32 %v968
    %v1033 = vcvt.s32.f32 %v969
    %v1034 = vcvt.s32.f32 %v970
    %v1035 = vcvt.s32.f32 %v971
    %v1036 = vcvt.s32.f32 %v972
    %v1037 = vcvt.s32.f32 %v973
    %v1038 = vcvt.s32.f32 %v974
    %v1039 = vcvt.s32.f32 %v975
    %v1040 = vcvt.s32.f32 %v976
    %v1041 = vcvt.s32.f32 %v977
    %v1042 = vcvt.s32.f32 %v978
    %v1043 = vcvt.s32.f32 %v979
    %v1044 = vcvt.s32.f32 %v980
    %v1045 = vcvt.s32.f32 %v981
    %v1046 = vcvt.s32.f32 %v982
    %v1047 = vcvt.s32.f32 %v983
    %v1048 = vcvt.s32.f32 %v984
    %v1049 = vcvt.s32.f32 %v985
    %v1050 = vcvt.s32.f32 %v986
    %v1051 = vcvt.s32.f32 %v987
    %v1052 = vcvt.s32.f32 %v988
    %v1053 = vcvt.s32.f32 %v989
    %v1054 = vcvt.s32.f32 %v990
    %v1055 = vcvt.s32.f32 %v991
    %v1056 = vcvt.s32.f32 %v992
    %v1057 = vadd.f32 %v673, %v993
    %v1058 = vadd.f32 %v674, %v994
    %v1059 = vadd.f32 %v675, %v995
    %v1060 = vadd.f32 %v676, %v996
    %v1061 = vadd.f32 %v677, %v997
    %v1062 = vadd.f32 %v678, %v998
    %v1063 = vadd.f32 %v679, %v999
    %v1064 = vadd.f32 %v680, %v1000
    %v1065 = vadd.f32 %v681, %v1001
    %v1066 = vadd.f32 %v682, %v1002
    %v1067 = vadd.f32 %v683, %v1003
    %v1068 = vadd.f32 %v684, %v1004
    %v1069 = vadd.f32 %v685, %v1005
    %v1070 = vadd.f32 %v686, %v1006
    %v1071 = vadd.f32 %v687, %v1007
    %v1072 = vadd.f32 %v688, %v1008
    %v1073 = vadd.f32 %v689, %v1009
    %v1074 = vadd.f32 %v690, %v1010
    %v1075 = vadd.f32 %v691, %v1011
    %v1076 = vadd.f32 %v692, %v1012
    %v1077 = vadd.f32 %v693, %v1013
    %v1078 = vadd.f32 %v694, %v1014
    %v1079 = vadd.f32 %v695, %v1015
    %v1080 = vadd.f32 %v696, %v1016
    %v1081 = vadd.f32 %v697, %v1017
    %v1082 = vadd.f32 %v698, %v1018
    %v1083 = vadd.f32 %v699, %v1019
    %v1084 = vadd.f32 %v700, %v1020
    %v1085 = vadd.f32 %v701, %v1021
    %v1086 = vadd.f32 %v702, %v1022
    %v1087 = vadd.f32 %v703, %v1023
    %v1088 = vadd.f32 %v704, %v1024
    %v1089 = vadd.f32 %v705, %v1025
    %v1090 = vadd.f32 %v706, %v1026
    %v1091 = vadd.f32 %v707, %v1027
    %v1092 = vadd.f32 %v708, %v1028
    %v1093 = vadd.f32 %v709, %v1029
    %v1094 = vadd.f32 %v710, %v1030
    %v1095 = vadd.f32 %v711, %v1031
    %v1096 = vadd.f32 %v712, %v1032
    %v1097 = vadd.f32 %v713, %v1033
    %v1098 = vadd.f32 %v714, %v1034
    %v1099 = vadd.f32 %v715, %v1035
    %v1100 = vadd.f32 %v716, %v1036
    %v1101 = vadd.f32 %v717, %v1037
    %v1102 = vadd.f32 %v718, %v1038
    %v1103 = vadd.f32 %v719, %v1039
    %v1104 = vadd.f32 %v720, %v1040
    %v1105 = vadd.f32 %v721, %v1041
    %v1106 = vadd.f32 %v722, %v1042
    %v1107 = vadd.f32 %v723, %v1043
    %v1108 = vadd.f32 %v724, %v1044
    %v1109 = vadd.f32 %v725, %v1045
    %v1110 = vadd.f32 %v726, %v1046
    %v1111 = vadd.f32 %v727, %v1047
    %v1112 = vadd.f32 %v728, %v1048
    %v1113 = vadd.f32 %v729, %v1049
    %v1114 = vadd.f32 %v730, %v1050
    %v1115 = vadd.f32 %v731, %v1051
    %v1116 = vadd.f32 %v732, %v1052
    %v1117 = vadd.f32 %v733, %v1053
    %v1118 = vadd.f32 %v734, %v1054
    %v1119 = vadd.f32 %v735, %v1055
    %v1120 = vadd.f32 %v736, %v1056
    %v1121 = vld [vmem:[%s3] sm:$0xff]
    %v1122 = vld [vmem:[%s3 + $0x8] sm:$0xff]
    %v1123 = vld [vmem:[%s3 + $0x10] sm:$0xff]
    %v1124 = vld [vmem:[%s3 + $0x18] sm:$0xff]
    %v1125 = vld [vmem:[%s3 + $0x20] sm:$0xff]
    %v1126 = vld [vmem:[%s3 + $0x28] sm:$0xff]
    %v1127 = vld [vmem:[%s3 + $0x30] sm:$0xff]
    %v1128 = vld [vmem:[%s3 + $0x38] sm:$0xff]
    %v1129 = vld [vmem:[%s3 + $0x40] sm:$0xff]
    %v1130 = vld [vmem:[%s3 + $0x48] sm:$0xff]
    %v1131 = vld [vmem:[%s3 + $0x50] sm:$0xff]
    %v1132 = vld [vmem:[%s3 + $0x58] sm:$0xff]
    %v1133 = vld [vmem:[%s3 + $0x60] sm:$0xff]
    %v1134 = vld [vmem:[%s3 + $0x68] sm:$0xff]
    %v1135 = vld [vmem:[%s3 + $0x70] sm:$0xff]
    %v1136 = vld [vmem:[%s3 + $0x78] sm:$0xff]
    %v1137 = vld [vmem:[%s3 + $0x80] sm:$0xff]
    %v1138 = vld [vmem:[%s3 + $0x88] sm:$0xff]
    %v1139 = vld [vmem:[%s3 + $0x90] sm:$0xff]
    %v1140 = vld [vmem:[%s3 + $0x98] sm:$0xff]
    %v1141 = vld [vmem:[%s3 + $0xa0] sm:$0xff]
    %v1142 = vld [vmem:[%s3 + $0xa8] sm:$0xff]
    %v1143 = vld [vmem:[%s3 + $0xb0] sm:$0xff]
    %v1144 = vld [vmem:[%s3 + $0xb8] sm:$0xff]
    %v1145 = vld [vmem:[%s3 + $0xc0] sm:$0xff]
    %v1146 = vld [vmem:[%s3 + $0xc8] sm:$0xff]
    %v1147 = vld [vmem:[%s3 + $0xd0] sm:$0xff]
    %v1148 = vld [vmem:[%s3 + $0xd8] sm:$0xff]
    %v1149 = vld [vmem:[%s3 + $0xe0] sm:$0xff]
    %v1150 = vld [vmem:[%s3 + $0xe8] sm:$0xff]
    %v1151 = vld [vmem:[%s3 + $0xf0] sm:$0xff]
    %v1152 = vld [vmem:[%s3 + $0xf8] sm:$0xff]
    %1153 = vset.pattern.permute.xlu0 0
    %1154 = vperm.xlu0 %1153, %v1121
    %v1155 = vpop.permute.xlu0 %1154
    %1156 = vset.pattern.permute.xlu0 0
    %1157 = vperm.xlu0 %1156, %v1122
    %v1158 = vpop.permute.xlu0 %1157
    %1159 = vset.pattern.permute.xlu0 0
    %1160 = vperm.xlu0 %1159, %v1123
    %v1161 = vpop.permute.xlu0 %1160
    %1162 = vset.pattern.permute.xlu0 0
    %1163 = vperm.xlu0 %1162, %v1124
    %v1164 = vpop.permute.xlu0 %1163
    %1165 = vset.pattern.permute.xlu0 0
    %1166 = vperm.xlu0 %1165, %v1125
    %v1167 = vpop.permute.xlu0 %1166
    %1168 = vset.pattern.permute.xlu0 0
    %1169 = vperm.xlu0 %1168, %v1126
    %v1170 = vpop.permute.xlu0 %1169
    %1171 = vset.pattern.permute.xlu0 0
    %1172 = vperm.xlu0 %1171, %v1127
    %v1173 = vpop.permute.xlu0 %1172
    %1174 = vset.pattern.permute.xlu0 0
    %1175 = vperm.xlu0 %1174, %v1128
    %v1176 = vpop.permute.xlu0 %1175
    %1177 = vset.pattern.permute.xlu0 0
    %1178 = vperm.xlu0 %1177, %v1129
    %v1179 = vpop.permute.xlu0 %1178
    %1180 = vset.pattern.permute.xlu0 0
    %1181 = vperm.xlu0 %1180, %v1130
    %v1182 = vpop.permute.xlu0 %1181
    %1183 = vset.pattern.permute.xlu0 0
    %1184 = vperm.xlu0 %1183, %v1131
    %v1185 = vpop.permute.xlu0 %1184
    %1186 = vset.pattern.permute.xlu0 0
    %1187 = vperm.xlu0 %1186, %v1132
    %v1188 = vpop.permute.xlu0 %1187
    %1189 = vset.pattern.permute.xlu0 0
    %1190 = vperm.xlu0 %1189, %v1133
    %v1191 = vpop.permute.xlu0 %1190
    %1192 = vset.pattern.permute.xlu0 0
    %1193 = vperm.xlu0 %1192, %v1134
    %v1194 = vpop.permute.xlu0 %1193
    %1195 = vset.pattern.permute.xlu0 0
    %1196 = vperm.xlu0 %1195, %v1135
    %v1197 = vpop.permute.xlu0 %1196
    %1198 = vset.pattern.permute.xlu0 0
    %1199 = vperm.xlu0 %1198, %v1136
    %v1200 = vpop.permute.xlu0 %1199
    %1201 = vset.pattern.permute.xlu0 0
    %1202 = vperm.xlu0 %1201, %v1137
    %v1203 = vpop.permute.xlu0 %1202
    %1204 = vset.pattern.permute.xlu0 0
    %1205 = vperm.xlu0 %1204, %v1138
    %v1206 = vpop.permute.xlu0 %1205
    %1207 = vset.pattern.permute.xlu0 0
    %1208 = vperm.xlu0 %1207, %v1139
    %v1209 = vpop.permute.xlu0 %1208
    %1210 = vset.pattern.permute.xlu0 0
    %1211 = vperm.xlu0 %1210, %v1140
    %v1212 = vpop.permute.xlu0 %1211
    %1213 = vset.pattern.permute.xlu0 0
    %1214 = vperm.xlu0 %1213, %v1141
    %v1215 = vpop.permute.xlu0 %1214
    %1216 = vset.pattern.permute.xlu0 0
    %1217 = vperm.xlu0 %1216, %v1142
    %v1218 = vpop.permute.xlu0 %1217
    %1219 = vset.pattern.permute.xlu0 0
    %1220 = vperm.xlu0 %1219, %v1143
    %v1221 = vpop.permute.xlu0 %1220
    %1222 = vset.pattern.permute.xlu0 0
    %1223 = vperm.xlu0 %1222, %v1144
    %v1224 = vpop.permute.xlu0 %1223
    %1225 = vset.pattern.permute.xlu0 0
    %1226 = vperm.xlu0 %1225, %v1145
    %v1227 = vpop.permute.xlu0 %1226
    %1228 = vset.pattern.permute.xlu0 0
    %1229 = vperm.xlu0 %1228, %v1146
    %v1230 = vpop.permute.xlu0 %1229
    %1231 = vset.pattern.permute.xlu0 0
    %1232 = vperm.xlu0 %1231, %v1147
    %v1233 = vpop.permute.xlu0 %1232
    %1234 = vset.pattern.permute.xlu0 0
    %1235 = vperm.xlu0 %1234, %v1148
    %v1236 = vpop.permute.xlu0 %1235
    %1237 = vset.pattern.permute.xlu0 0
    %1238 = vperm.xlu0 %1237, %v1149
    %v1239 = vpop.permute.xlu0 %1238
    %1240 = vset.pattern.permute.xlu0 0
    %1241 = vperm.xlu0 %1240, %v1150
    %v1242 = vpop.permute.xlu0 %1241
    %1243 = vset.pattern.permute.xlu0 0
    %1244 = vperm.xlu0 %1243, %v1151
    %v1245 = vpop.permute.xlu0 %1244
    %1246 = vset.pattern.permute.xlu0 0
    %1247 = vperm.xlu0 %1246, %v1152
    %v1248 = vpop.permute.xlu0 %1247
    %vm1249 = vcmp.eq.s32.totalorder %v1155, %v31
    %vm1250 = vcmp.eq.s32.totalorder %v1155, %v32
    %vm1251 = vcmp.eq.s32.totalorder %v1158, %v31
    %vm1252 = vcmp.eq.s32.totalorder %v1158, %v32
    %vm1253 = vcmp.eq.s32.totalorder %v1161, %v31
    %vm1254 = vcmp.eq.s32.totalorder %v1161, %v32
    %vm1255 = vcmp.eq.s32.totalorder %v1164, %v31
    %vm1256 = vcmp.eq.s32.totalorder %v1164, %v32
    %vm1257 = vcmp.eq.s32.totalorder %v1167, %v31
    %vm1258 = vcmp.eq.s32.totalorder %v1167, %v32
    %vm1259 = vcmp.eq.s32.totalorder %v1170, %v31
    %vm1260 = vcmp.eq.s32.totalorder %v1170, %v32
    %vm1261 = vcmp.eq.s32.totalorder %v1173, %v31
    %vm1262 = vcmp.eq.s32.totalorder %v1173, %v32
    %vm1263 = vcmp.eq.s32.totalorder %v1176, %v31
    %vm1264 = vcmp.eq.s32.totalorder %v1176, %v32
    %vm1265 = vcmp.eq.s32.totalorder %v1179, %v31
    %vm1266 = vcmp.eq.s32.totalorder %v1179, %v32
    %vm1267 = vcmp.eq.s32.totalorder %v1182, %v31
    %vm1268 = vcmp.eq.s32.totalorder %v1182, %v32
    %vm1269 = vcmp.eq.s32.totalorder %v1185, %v31
    %vm1270 = vcmp.eq.s32.totalorder %v1185, %v32
    %vm1271 = vcmp.eq.s32.totalorder %v1188, %v31
    %vm1272 = vcmp.eq.s32.totalorder %v1188, %v32
    %vm1273 = vcmp.eq.s32.totalorder %v1191, %v31
    %vm1274 = vcmp.eq.s32.totalorder %v1191, %v32
    %vm1275 = vcmp.eq.s32.totalorder %v1194, %v31
    %vm1276 = vcmp.eq.s32.totalorder %v1194, %v32
    %vm1277 = vcmp.eq.s32.totalorder %v1197, %v31
    %vm1278 = vcmp.eq.s32.totalorder %v1197, %v32
    %vm1279 = vcmp.eq.s32.totalorder %v1200, %v31
    %vm1280 = vcmp.eq.s32.totalorder %v1200, %v32
    %vm1281 = vcmp.eq.s32.totalorder %v1203, %v31
    %vm1282 = vcmp.eq.s32.totalorder %v1203, %v32
    %vm1283 = vcmp.eq.s32.totalorder %v1206, %v31
    %vm1284 = vcmp.eq.s32.totalorder %v1206, %v32
    %vm1285 = vcmp.eq.s32.totalorder %v1209, %v31
    %vm1286 = vcmp.eq.s32.totalorder %v1209, %v32
    %vm1287 = vcmp.eq.s32.totalorder %v1212, %v31
    %vm1288 = vcmp.eq.s32.totalorder %v1212, %v32
    %vm1289 = vcmp.eq.s32.totalorder %v1215, %v31
    %vm1290 = vcmp.eq.s32.totalorder %v1215, %v32
    %vm1291 = vcmp.eq.s32.totalorder %v1218, %v31
    %vm1292 = vcmp.eq.s32.totalorder %v1218, %v32
    %vm1293 = vcmp.eq.s32.totalorder %v1221, %v31
    %vm1294 = vcmp.eq.s32.totalorder %v1221, %v32
    %vm1295 = vcmp.eq.s32.totalorder %v1224, %v31
    %vm1296 = vcmp.eq.s32.totalorder %v1224, %v32
    %vm1297 = vcmp.eq.s32.totalorder %v1227, %v31
    %vm1298 = vcmp.eq.s32.totalorder %v1227, %v32
    %vm1299 = vcmp.eq.s32.totalorder %v1230, %v31
    %vm1300 = vcmp.eq.s32.totalorder %v1230, %v32
    %vm1301 = vcmp.eq.s32.totalorder %v1233, %v31
    %vm1302 = vcmp.eq.s32.totalorder %v1233, %v32
    %vm1303 = vcmp.eq.s32.totalorder %v1236, %v31
    %vm1304 = vcmp.eq.s32.totalorder %v1236, %v32
    %vm1305 = vcmp.eq.s32.totalorder %v1239, %v31
    %vm1306 = vcmp.eq.s32.totalorder %v1239, %v32
    %vm1307 = vcmp.eq.s32.totalorder %v1242, %v31
    %vm1308 = vcmp.eq.s32.totalorder %v1242, %v32
    %vm1309 = vcmp.eq.s32.totalorder %v1245, %v31
    %vm1310 = vcmp.eq.s32.totalorder %v1245, %v32
    %vm1311 = vcmp.eq.s32.totalorder %v1248, %v31
    %vm1312 = vcmp.eq.s32.totalorder %v1248, %v32
    %v1313 = vsel %vm1249, 1, 0
    %v1314 = vsel %vm1250, 1, 0
    %v1315 = vsel %vm1251, 1, 0
    %v1316 = vsel %vm1252, 1, 0
    %v1317 = vsel %vm1253, 1, 0
    %v1318 = vsel %vm1254, 1, 0
    %v1319 = vsel %vm1255, 1, 0
    %v1320 = vsel %vm1256, 1, 0
    %v1321 = vsel %vm1257, 1, 0
    %v1322 = vsel %vm1258, 1, 0
    %v1323 = vsel %vm1259, 1, 0
    %v1324 = vsel %vm1260, 1, 0
    %v1325 = vsel %vm1261, 1, 0
    %v1326 = vsel %vm1262, 1, 0
    %v1327 = vsel %vm1263, 1, 0
    %v1328 = vsel %vm1264, 1, 0
    %v1329 = vsel %vm1265, 1, 0
    %v1330 = vsel %vm1266, 1, 0
    %v1331 = vsel %vm1267, 1, 0
    %v1332 = vsel %vm1268, 1, 0
    %v1333 = vsel %vm1269, 1, 0
    %v1334 = vsel %vm1270, 1, 0
    %v1335 = vsel %vm1271, 1, 0
    %v1336 = vsel %vm1272, 1, 0
    %v1337 = vsel %vm1273, 1, 0
    %v1338 = vsel %vm1274, 1, 0
    %v1339 = vsel %vm1275, 1, 0
    %v1340 = vsel %vm1276, 1, 0
    %v1341 = vsel %vm1277, 1, 0
    %v1342 = vsel %vm1278, 1, 0
    %v1343 = vsel %vm1279, 1, 0
    %v1344 = vsel %vm1280, 1, 0
    %v1345 = vsel %vm1281, 1, 0
    %v1346 = vsel %vm1282, 1, 0
    %v1347 = vsel %vm1283, 1, 0
    %v1348 = vsel %vm1284, 1, 0
    %v1349 = vsel %vm1285, 1, 0
    %v1350 = vsel %vm1286, 1, 0
    %v1351 = vsel %vm1287, 1, 0
    %v1352 = vsel %vm1288, 1, 0
    %v1353 = vsel %vm1289, 1, 0
    %v1354 = vsel %vm1290, 1, 0
    %v1355 = vsel %vm1291, 1, 0
    %v1356 = vsel %vm1292, 1, 0
    %v1357 = vsel %vm1293, 1, 0
    %v1358 = vsel %vm1294, 1, 0
    %v1359 = vsel %vm1295, 1, 0
    %v1360 = vsel %vm1296, 1, 0
    %v1361 = vsel %vm1297, 1, 0
    %v1362 = vsel %vm1298, 1, 0
    %v1363 = vsel %vm1299, 1, 0
    %v1364 = vsel %vm1300, 1, 0
    %v1365 = vsel %vm1301, 1, 0
    %v1366 = vsel %vm1302, 1, 0
    %v1367 = vsel %vm1303, 1, 0
    %v1368 = vsel %vm1304, 1, 0
    %v1369 = vsel %vm1305, 1, 0
    %v1370 = vsel %vm1306, 1, 0
    %v1371 = vsel %vm1307, 1, 0
    %v1372 = vsel %vm1308, 1, 0
    %v1373 = vsel %vm1309, 1, 0
    %v1374 = vsel %vm1310, 1, 0
    %v1375 = vsel %vm1311, 1, 0
    %v1376 = vsel %vm1312, 1, 0
    %v1377 = vcvt.s32.f32 %v1313
    %v1378 = vcvt.s32.f32 %v1314
    %v1379 = vcvt.s32.f32 %v1315
    %v1380 = vcvt.s32.f32 %v1316
    %v1381 = vcvt.s32.f32 %v1317
    %v1382 = vcvt.s32.f32 %v1318
    %v1383 = vcvt.s32.f32 %v1319
    %v1384 = vcvt.s32.f32 %v1320
    %v1385 = vcvt.s32.f32 %v1321
    %v1386 = vcvt.s32.f32 %v1322
    %v1387 = vcvt.s32.f32 %v1323
    %v1388 = vcvt.s32.f32 %v1324
    %v1389 = vcvt.s32.f32 %v1325
    %v1390 = vcvt.s32.f32 %v1326
    %v1391 = vcvt.s32.f32 %v1327
    %v1392 = vcvt.s32.f32 %v1328
    %v1393 = vcvt.s32.f32 %v1329
    %v1394 = vcvt.s32.f32 %v1330
    %v1395 = vcvt.s32.f32 %v1331
    %v1396 = vcvt.s32.f32 %v1332
    %v1397 = vcvt.s32.f32 %v1333
    %v1398 = vcvt.s32.f32 %v1334
    %v1399 = vcvt.s32.f32 %v1335
    %v1400 = vcvt.s32.f32 %v1336
    %v1401 = vcvt.s32.f32 %v1337
    %v1402 = vcvt.s32.f32 %v1338
    %v1403 = vcvt.s32.f32 %v1339
    %v1404 = vcvt.s32.f32 %v1340
    %v1405 = vcvt.s32.f32 %v1341
    %v1406 = vcvt.s32.f32 %v1342
    %v1407 = vcvt.s32.f32 %v1343
    %v1408 = vcvt.s32.f32 %v1344
    %v1409 = vcvt.s32.f32 %v1345
    %v1410 = vcvt.s32.f32 %v1346
    %v1411 = vcvt.s32.f32 %v1347
    %v1412 = vcvt.s32.f32 %v1348
    %v1413 = vcvt.s32.f32 %v1349
    %v1414 = vcvt.s32.f32 %v1350
    %v1415 = vcvt.s32.f32 %v1351
    %v1416 = vcvt.s32.f32 %v1352
    %v1417 = vcvt.s32.f32 %v1353
    %v1418 = vcvt.s32.f32 %v1354
    %v1419 = vcvt.s32.f32 %v1355
    %v1420 = vcvt.s32.f32 %v1356
    %v1421 = vcvt.s32.f32 %v1357
    %v1422 = vcvt.s32.f32 %v1358
    %v1423 = vcvt.s32.f32 %v1359
    %v1424 = vcvt.s32.f32 %v1360
    %v1425 = vcvt.s32.f32 %v1361
    %v1426 = vcvt.s32.f32 %v1362
    %v1427 = vcvt.s32.f32 %v1363
    %v1428 = vcvt.s32.f32 %v1364
    %v1429 = vcvt.s32.f32 %v1365
    %v1430 = vcvt.s32.f32 %v1366
    %v1431 = vcvt.s32.f32 %v1367
    %v1432 = vcvt.s32.f32 %v1368
    %v1433 = vcvt.s32.f32 %v1369
    %v1434 = vcvt.s32.f32 %v1370
    %v1435 = vcvt.s32.f32 %v1371
    %v1436 = vcvt.s32.f32 %v1372
    %v1437 = vcvt.s32.f32 %v1373
    %v1438 = vcvt.s32.f32 %v1374
    %v1439 = vcvt.s32.f32 %v1375
    %v1440 = vcvt.s32.f32 %v1376
    %v1441 = vadd.f32 %v1057, %v1377
    %v1442 = vadd.f32 %v1058, %v1378
    %v1443 = vadd.f32 %v1059, %v1379
    %v1444 = vadd.f32 %v1060, %v1380
    %v1445 = vadd.f32 %v1061, %v1381
    %v1446 = vadd.f32 %v1062, %v1382
    %v1447 = vadd.f32 %v1063, %v1383
    %v1448 = vadd.f32 %v1064, %v1384
    %v1449 = vadd.f32 %v1065, %v1385
    %v1450 = vadd.f32 %v1066, %v1386
    %v1451 = vadd.f32 %v1067, %v1387
    %v1452 = vadd.f32 %v1068, %v1388
    %v1453 = vadd.f32 %v1069, %v1389
    %v1454 = vadd.f32 %v1070, %v1390
    %v1455 = vadd.f32 %v1071, %v1391
    %v1456 = vadd.f32 %v1072, %v1392
    %v1457 = vadd.f32 %v1073, %v1393
    %v1458 = vadd.f32 %v1074, %v1394
    %v1459 = vadd.f32 %v1075, %v1395
    %v1460 = vadd.f32 %v1076, %v1396
    %v1461 = vadd.f32 %v1077, %v1397
    %v1462 = vadd.f32 %v1078, %v1398
    %v1463 = vadd.f32 %v1079, %v1399
    %v1464 = vadd.f32 %v1080, %v1400
    %v1465 = vadd.f32 %v1081, %v1401
    %v1466 = vadd.f32 %v1082, %v1402
    %v1467 = vadd.f32 %v1083, %v1403
    %v1468 = vadd.f32 %v1084, %v1404
    %v1469 = vadd.f32 %v1085, %v1405
    %v1470 = vadd.f32 %v1086, %v1406
    %v1471 = vadd.f32 %v1087, %v1407
    %v1472 = vadd.f32 %v1088, %v1408
    %v1473 = vadd.f32 %v1089, %v1409
    %v1474 = vadd.f32 %v1090, %v1410
    %v1475 = vadd.f32 %v1091, %v1411
    %v1476 = vadd.f32 %v1092, %v1412
    %v1477 = vadd.f32 %v1093, %v1413
    %v1478 = vadd.f32 %v1094, %v1414
    %v1479 = vadd.f32 %v1095, %v1415
    %v1480 = vadd.f32 %v1096, %v1416
    %v1481 = vadd.f32 %v1097, %v1417
    %v1482 = vadd.f32 %v1098, %v1418
    %v1483 = vadd.f32 %v1099, %v1419
    %v1484 = vadd.f32 %v1100, %v1420
    %v1485 = vadd.f32 %v1101, %v1421
    %v1486 = vadd.f32 %v1102, %v1422
    %v1487 = vadd.f32 %v1103, %v1423
    %v1488 = vadd.f32 %v1104, %v1424
    %v1489 = vadd.f32 %v1105, %v1425
    %v1490 = vadd.f32 %v1106, %v1426
    %v1491 = vadd.f32 %v1107, %v1427
    %v1492 = vadd.f32 %v1108, %v1428
    %v1493 = vadd.f32 %v1109, %v1429
    %v1494 = vadd.f32 %v1110, %v1430
    %v1495 = vadd.f32 %v1111, %v1431
    %v1496 = vadd.f32 %v1112, %v1432
    %v1497 = vadd.f32 %v1113, %v1433
    %v1498 = vadd.f32 %v1114, %v1434
    %v1499 = vadd.f32 %v1115, %v1435
    %v1500 = vadd.f32 %v1116, %v1436
    %v1501 = vadd.f32 %v1117, %v1437
    %v1502 = vadd.f32 %v1118, %v1438
    %v1503 = vadd.f32 %v1119, %v1439
    %v1504 = vadd.f32 %v1120, %v1440
    %v1505 = vld [vmem:[%s4] sm:$0xff]
    %v1506 = vld [vmem:[%s4 + $0x8] sm:$0xff]
    %v1507 = vld [vmem:[%s4 + $0x10] sm:$0xff]
    %v1508 = vld [vmem:[%s4 + $0x18] sm:$0xff]
    %v1509 = vld [vmem:[%s4 + $0x20] sm:$0xff]
    %v1510 = vld [vmem:[%s4 + $0x28] sm:$0xff]
    %v1511 = vld [vmem:[%s4 + $0x30] sm:$0xff]
    %v1512 = vld [vmem:[%s4 + $0x38] sm:$0xff]
    %v1513 = vld [vmem:[%s4 + $0x40] sm:$0xff]
    %v1514 = vld [vmem:[%s4 + $0x48] sm:$0xff]
    %v1515 = vld [vmem:[%s4 + $0x50] sm:$0xff]
    %v1516 = vld [vmem:[%s4 + $0x58] sm:$0xff]
    %v1517 = vld [vmem:[%s4 + $0x60] sm:$0xff]
    %v1518 = vld [vmem:[%s4 + $0x68] sm:$0xff]
    %v1519 = vld [vmem:[%s4 + $0x70] sm:$0xff]
    %v1520 = vld [vmem:[%s4 + $0x78] sm:$0xff]
    %v1521 = vld [vmem:[%s4 + $0x80] sm:$0xff]
    %v1522 = vld [vmem:[%s4 + $0x88] sm:$0xff]
    %v1523 = vld [vmem:[%s4 + $0x90] sm:$0xff]
    %v1524 = vld [vmem:[%s4 + $0x98] sm:$0xff]
    %v1525 = vld [vmem:[%s4 + $0xa0] sm:$0xff]
    %v1526 = vld [vmem:[%s4 + $0xa8] sm:$0xff]
    %v1527 = vld [vmem:[%s4 + $0xb0] sm:$0xff]
    %v1528 = vld [vmem:[%s4 + $0xb8] sm:$0xff]
    %v1529 = vld [vmem:[%s4 + $0xc0] sm:$0xff]
    %v1530 = vld [vmem:[%s4 + $0xc8] sm:$0xff]
    %v1531 = vld [vmem:[%s4 + $0xd0] sm:$0xff]
    %v1532 = vld [vmem:[%s4 + $0xd8] sm:$0xff]
    %v1533 = vld [vmem:[%s4 + $0xe0] sm:$0xff]
    %v1534 = vld [vmem:[%s4 + $0xe8] sm:$0xff]
    %v1535 = vld [vmem:[%s4 + $0xf0] sm:$0xff]
    %v1536 = vld [vmem:[%s4 + $0xf8] sm:$0xff]
    %1537 = vset.pattern.permute.xlu0 0
    %1538 = vperm.xlu0 %1537, %v1505
    %v1539 = vpop.permute.xlu0 %1538
    %1540 = vset.pattern.permute.xlu0 0
    %1541 = vperm.xlu0 %1540, %v1506
    %v1542 = vpop.permute.xlu0 %1541
    %1543 = vset.pattern.permute.xlu0 0
    %1544 = vperm.xlu0 %1543, %v1507
    %v1545 = vpop.permute.xlu0 %1544
    %1546 = vset.pattern.permute.xlu0 0
    %1547 = vperm.xlu0 %1546, %v1508
    %v1548 = vpop.permute.xlu0 %1547
    %1549 = vset.pattern.permute.xlu0 0
    %1550 = vperm.xlu0 %1549, %v1509
    %v1551 = vpop.permute.xlu0 %1550
    %1552 = vset.pattern.permute.xlu0 0
    %1553 = vperm.xlu0 %1552, %v1510
    %v1554 = vpop.permute.xlu0 %1553
    %1555 = vset.pattern.permute.xlu0 0
    %1556 = vperm.xlu0 %1555, %v1511
    %v1557 = vpop.permute.xlu0 %1556
    %1558 = vset.pattern.permute.xlu0 0
    %1559 = vperm.xlu0 %1558, %v1512
    %v1560 = vpop.permute.xlu0 %1559
    %1561 = vset.pattern.permute.xlu0 0
    %1562 = vperm.xlu0 %1561, %v1513
    %v1563 = vpop.permute.xlu0 %1562
    %1564 = vset.pattern.permute.xlu0 0
    %1565 = vperm.xlu0 %1564, %v1514
    %v1566 = vpop.permute.xlu0 %1565
    %1567 = vset.pattern.permute.xlu0 0
    %1568 = vperm.xlu0 %1567, %v1515
    %v1569 = vpop.permute.xlu0 %1568
    %1570 = vset.pattern.permute.xlu0 0
    %1571 = vperm.xlu0 %1570, %v1516
    %v1572 = vpop.permute.xlu0 %1571
    %1573 = vset.pattern.permute.xlu0 0
    %1574 = vperm.xlu0 %1573, %v1517
    %v1575 = vpop.permute.xlu0 %1574
    %1576 = vset.pattern.permute.xlu0 0
    %1577 = vperm.xlu0 %1576, %v1518
    %v1578 = vpop.permute.xlu0 %1577
    %1579 = vset.pattern.permute.xlu0 0
    %1580 = vperm.xlu0 %1579, %v1519
    %v1581 = vpop.permute.xlu0 %1580
    %1582 = vset.pattern.permute.xlu0 0
    %1583 = vperm.xlu0 %1582, %v1520
    %v1584 = vpop.permute.xlu0 %1583
    %1585 = vset.pattern.permute.xlu0 0
    %1586 = vperm.xlu0 %1585, %v1521
    %v1587 = vpop.permute.xlu0 %1586
    %1588 = vset.pattern.permute.xlu0 0
    %1589 = vperm.xlu0 %1588, %v1522
    %v1590 = vpop.permute.xlu0 %1589
    %1591 = vset.pattern.permute.xlu0 0
    %1592 = vperm.xlu0 %1591, %v1523
    %v1593 = vpop.permute.xlu0 %1592
    %1594 = vset.pattern.permute.xlu0 0
    %1595 = vperm.xlu0 %1594, %v1524
    %v1596 = vpop.permute.xlu0 %1595
    %1597 = vset.pattern.permute.xlu0 0
    %1598 = vperm.xlu0 %1597, %v1525
    %v1599 = vpop.permute.xlu0 %1598
    %1600 = vset.pattern.permute.xlu0 0
    %1601 = vperm.xlu0 %1600, %v1526
    %v1602 = vpop.permute.xlu0 %1601
    %1603 = vset.pattern.permute.xlu0 0
    %1604 = vperm.xlu0 %1603, %v1527
    %v1605 = vpop.permute.xlu0 %1604
    %1606 = vset.pattern.permute.xlu0 0
    %1607 = vperm.xlu0 %1606, %v1528
    %v1608 = vpop.permute.xlu0 %1607
    %1609 = vset.pattern.permute.xlu0 0
    %1610 = vperm.xlu0 %1609, %v1529
    %v1611 = vpop.permute.xlu0 %1610
    %1612 = vset.pattern.permute.xlu0 0
    %1613 = vperm.xlu0 %1612, %v1530
    %v1614 = vpop.permute.xlu0 %1613
    %1615 = vset.pattern.permute.xlu0 0
    %1616 = vperm.xlu0 %1615, %v1531
    %v1617 = vpop.permute.xlu0 %1616
    %1618 = vset.pattern.permute.xlu0 0
    %1619 = vperm.xlu0 %1618, %v1532
    %v1620 = vpop.permute.xlu0 %1619
    %1621 = vset.pattern.permute.xlu0 0
    %1622 = vperm.xlu0 %1621, %v1533
    %v1623 = vpop.permute.xlu0 %1622
    %1624 = vset.pattern.permute.xlu0 0
    %1625 = vperm.xlu0 %1624, %v1534
    %v1626 = vpop.permute.xlu0 %1625
    %1627 = vset.pattern.permute.xlu0 0
    %1628 = vperm.xlu0 %1627, %v1535
    %v1629 = vpop.permute.xlu0 %1628
    %1630 = vset.pattern.permute.xlu0 0
    %1631 = vperm.xlu0 %1630, %v1536
    %v1632 = vpop.permute.xlu0 %1631
    %vm1633 = vcmp.eq.s32.totalorder %v1539, %v31
    %vm1634 = vcmp.eq.s32.totalorder %v1539, %v32
    %vm1635 = vcmp.eq.s32.totalorder %v1542, %v31
    %vm1636 = vcmp.eq.s32.totalorder %v1542, %v32
    %vm1637 = vcmp.eq.s32.totalorder %v1545, %v31
    %vm1638 = vcmp.eq.s32.totalorder %v1545, %v32
    %vm1639 = vcmp.eq.s32.totalorder %v1548, %v31
    %vm1640 = vcmp.eq.s32.totalorder %v1548, %v32
    %vm1641 = vcmp.eq.s32.totalorder %v1551, %v31
    %vm1642 = vcmp.eq.s32.totalorder %v1551, %v32
    %vm1643 = vcmp.eq.s32.totalorder %v1554, %v31
    %vm1644 = vcmp.eq.s32.totalorder %v1554, %v32
    %vm1645 = vcmp.eq.s32.totalorder %v1557, %v31
    %vm1646 = vcmp.eq.s32.totalorder %v1557, %v32
    %vm1647 = vcmp.eq.s32.totalorder %v1560, %v31
    %vm1648 = vcmp.eq.s32.totalorder %v1560, %v32
    %vm1649 = vcmp.eq.s32.totalorder %v1563, %v31
    %vm1650 = vcmp.eq.s32.totalorder %v1563, %v32
    %vm1651 = vcmp.eq.s32.totalorder %v1566, %v31
    %vm1652 = vcmp.eq.s32.totalorder %v1566, %v32
    %vm1653 = vcmp.eq.s32.totalorder %v1569, %v31
    %vm1654 = vcmp.eq.s32.totalorder %v1569, %v32
    %vm1655 = vcmp.eq.s32.totalorder %v1572, %v31
    %vm1656 = vcmp.eq.s32.totalorder %v1572, %v32
    %vm1657 = vcmp.eq.s32.totalorder %v1575, %v31
    %vm1658 = vcmp.eq.s32.totalorder %v1575, %v32
    %vm1659 = vcmp.eq.s32.totalorder %v1578, %v31
    %vm1660 = vcmp.eq.s32.totalorder %v1578, %v32
    %vm1661 = vcmp.eq.s32.totalorder %v1581, %v31
    %vm1662 = vcmp.eq.s32.totalorder %v1581, %v32
    %vm1663 = vcmp.eq.s32.totalorder %v1584, %v31
    %vm1664 = vcmp.eq.s32.totalorder %v1584, %v32
    %vm1665 = vcmp.eq.s32.totalorder %v1587, %v31
    %vm1666 = vcmp.eq.s32.totalorder %v1587, %v32
    %vm1667 = vcmp.eq.s32.totalorder %v1590, %v31
    %vm1668 = vcmp.eq.s32.totalorder %v1590, %v32
    %vm1669 = vcmp.eq.s32.totalorder %v1593, %v31
    %vm1670 = vcmp.eq.s32.totalorder %v1593, %v32
    %vm1671 = vcmp.eq.s32.totalorder %v1596, %v31
    %vm1672 = vcmp.eq.s32.totalorder %v1596, %v32
    %vm1673 = vcmp.eq.s32.totalorder %v1599, %v31
    %vm1674 = vcmp.eq.s32.totalorder %v1599, %v32
    %vm1675 = vcmp.eq.s32.totalorder %v1602, %v31
    %vm1676 = vcmp.eq.s32.totalorder %v1602, %v32
    %vm1677 = vcmp.eq.s32.totalorder %v1605, %v31
    %vm1678 = vcmp.eq.s32.totalorder %v1605, %v32
    %vm1679 = vcmp.eq.s32.totalorder %v1608, %v31
    %vm1680 = vcmp.eq.s32.totalorder %v1608, %v32
    %vm1681 = vcmp.eq.s32.totalorder %v1611, %v31
    %vm1682 = vcmp.eq.s32.totalorder %v1611, %v32
    %vm1683 = vcmp.eq.s32.totalorder %v1614, %v31
    %vm1684 = vcmp.eq.s32.totalorder %v1614, %v32
    %vm1685 = vcmp.eq.s32.totalorder %v1617, %v31
    %vm1686 = vcmp.eq.s32.totalorder %v1617, %v32
    %vm1687 = vcmp.eq.s32.totalorder %v1620, %v31
    %vm1688 = vcmp.eq.s32.totalorder %v1620, %v32
    %vm1689 = vcmp.eq.s32.totalorder %v1623, %v31
    %vm1690 = vcmp.eq.s32.totalorder %v1623, %v32
    %vm1691 = vcmp.eq.s32.totalorder %v1626, %v31
    %vm1692 = vcmp.eq.s32.totalorder %v1626, %v32
    %vm1693 = vcmp.eq.s32.totalorder %v1629, %v31
    %vm1694 = vcmp.eq.s32.totalorder %v1629, %v32
    %vm1695 = vcmp.eq.s32.totalorder %v1632, %v31
    %vm1696 = vcmp.eq.s32.totalorder %v1632, %v32
    %v1697 = vsel %vm1633, 1, 0
    %v1698 = vsel %vm1634, 1, 0
    %v1699 = vsel %vm1635, 1, 0
    %v1700 = vsel %vm1636, 1, 0
    %v1701 = vsel %vm1637, 1, 0
    %v1702 = vsel %vm1638, 1, 0
    %v1703 = vsel %vm1639, 1, 0
    %v1704 = vsel %vm1640, 1, 0
    %v1705 = vsel %vm1641, 1, 0
    %v1706 = vsel %vm1642, 1, 0
    %v1707 = vsel %vm1643, 1, 0
    %v1708 = vsel %vm1644, 1, 0
    %v1709 = vsel %vm1645, 1, 0
    %v1710 = vsel %vm1646, 1, 0
    %v1711 = vsel %vm1647, 1, 0
    %v1712 = vsel %vm1648, 1, 0
    %v1713 = vsel %vm1649, 1, 0
    %v1714 = vsel %vm1650, 1, 0
    %v1715 = vsel %vm1651, 1, 0
    %v1716 = vsel %vm1652, 1, 0
    %v1717 = vsel %vm1653, 1, 0
    %v1718 = vsel %vm1654, 1, 0
    %v1719 = vsel %vm1655, 1, 0
    %v1720 = vsel %vm1656, 1, 0
    %v1721 = vsel %vm1657, 1, 0
    %v1722 = vsel %vm1658, 1, 0
    %v1723 = vsel %vm1659, 1, 0
    %v1724 = vsel %vm1660, 1, 0
    %v1725 = vsel %vm1661, 1, 0
    %v1726 = vsel %vm1662, 1, 0
    %v1727 = vsel %vm1663, 1, 0
    %v1728 = vsel %vm1664, 1, 0
    %v1729 = vsel %vm1665, 1, 0
    %v1730 = vsel %vm1666, 1, 0
    %v1731 = vsel %vm1667, 1, 0
    %v1732 = vsel %vm1668, 1, 0
    %v1733 = vsel %vm1669, 1, 0
    %v1734 = vsel %vm1670, 1, 0
    %v1735 = vsel %vm1671, 1, 0
    %v1736 = vsel %vm1672, 1, 0
    %v1737 = vsel %vm1673, 1, 0
    %v1738 = vsel %vm1674, 1, 0
    %v1739 = vsel %vm1675, 1, 0
    %v1740 = vsel %vm1676, 1, 0
    %v1741 = vsel %vm1677, 1, 0
    %v1742 = vsel %vm1678, 1, 0
    %v1743 = vsel %vm1679, 1, 0
    %v1744 = vsel %vm1680, 1, 0
    %v1745 = vsel %vm1681, 1, 0
    %v1746 = vsel %vm1682, 1, 0
    %v1747 = vsel %vm1683, 1, 0
    %v1748 = vsel %vm1684, 1, 0
    %v1749 = vsel %vm1685, 1, 0
    %v1750 = vsel %vm1686, 1, 0
    %v1751 = vsel %vm1687, 1, 0
    %v1752 = vsel %vm1688, 1, 0
    %v1753 = vsel %vm1689, 1, 0
    %v1754 = vsel %vm1690, 1, 0
    %v1755 = vsel %vm1691, 1, 0
    %v1756 = vsel %vm1692, 1, 0
    %v1757 = vsel %vm1693, 1, 0
    %v1758 = vsel %vm1694, 1, 0
    %v1759 = vsel %vm1695, 1, 0
    %v1760 = vsel %vm1696, 1, 0
    %v1761 = vcvt.s32.f32 %v1697
    %v1762 = vcvt.s32.f32 %v1698
    %v1763 = vcvt.s32.f32 %v1699
    %v1764 = vcvt.s32.f32 %v1700
    %v1765 = vcvt.s32.f32 %v1701
    %v1766 = vcvt.s32.f32 %v1702
    %v1767 = vcvt.s32.f32 %v1703
    %v1768 = vcvt.s32.f32 %v1704
    %v1769 = vcvt.s32.f32 %v1705
    %v1770 = vcvt.s32.f32 %v1706
    %v1771 = vcvt.s32.f32 %v1707
    %v1772 = vcvt.s32.f32 %v1708
    %v1773 = vcvt.s32.f32 %v1709
    %v1774 = vcvt.s32.f32 %v1710
    %v1775 = vcvt.s32.f32 %v1711
    %v1776 = vcvt.s32.f32 %v1712
    %v1777 = vcvt.s32.f32 %v1713
    %v1778 = vcvt.s32.f32 %v1714
    %v1779 = vcvt.s32.f32 %v1715
    %v1780 = vcvt.s32.f32 %v1716
    %v1781 = vcvt.s32.f32 %v1717
    %v1782 = vcvt.s32.f32 %v1718
    %v1783 = vcvt.s32.f32 %v1719
    %v1784 = vcvt.s32.f32 %v1720
    %v1785 = vcvt.s32.f32 %v1721
    %v1786 = vcvt.s32.f32 %v1722
    %v1787 = vcvt.s32.f32 %v1723
    %v1788 = vcvt.s32.f32 %v1724
    %v1789 = vcvt.s32.f32 %v1725
    %v1790 = vcvt.s32.f32 %v1726
    %v1791 = vcvt.s32.f32 %v1727
    %v1792 = vcvt.s32.f32 %v1728
    %v1793 = vcvt.s32.f32 %v1729
    %v1794 = vcvt.s32.f32 %v1730
    %v1795 = vcvt.s32.f32 %v1731
    %v1796 = vcvt.s32.f32 %v1732
    %v1797 = vcvt.s32.f32 %v1733
    %v1798 = vcvt.s32.f32 %v1734
    %v1799 = vcvt.s32.f32 %v1735
    %v1800 = vcvt.s32.f32 %v1736
    %v1801 = vcvt.s32.f32 %v1737
    %v1802 = vcvt.s32.f32 %v1738
    %v1803 = vcvt.s32.f32 %v1739
    %v1804 = vcvt.s32.f32 %v1740
    %v1805 = vcvt.s32.f32 %v1741
    %v1806 = vcvt.s32.f32 %v1742
    %v1807 = vcvt.s32.f32 %v1743
    %v1808 = vcvt.s32.f32 %v1744
    %v1809 = vcvt.s32.f32 %v1745
    %v1810 = vcvt.s32.f32 %v1746
    %v1811 = vcvt.s32.f32 %v1747
    %v1812 = vcvt.s32.f32 %v1748
    %v1813 = vcvt.s32.f32 %v1749
    %v1814 = vcvt.s32.f32 %v1750
    %v1815 = vcvt.s32.f32 %v1751
    %v1816 = vcvt.s32.f32 %v1752
    %v1817 = vcvt.s32.f32 %v1753
    %v1818 = vcvt.s32.f32 %v1754
    %v1819 = vcvt.s32.f32 %v1755
    %v1820 = vcvt.s32.f32 %v1756
    %v1821 = vcvt.s32.f32 %v1757
    %v1822 = vcvt.s32.f32 %v1758
    %v1823 = vcvt.s32.f32 %v1759
    %v1824 = vcvt.s32.f32 %v1760
    %v1825 = vadd.f32 %v1441, %v1761
    %v1826 = vadd.f32 %v1442, %v1762
    %v1827 = vadd.f32 %v1443, %v1763
    %v1828 = vadd.f32 %v1444, %v1764
    %v1829 = vadd.f32 %v1445, %v1765
    %v1830 = vadd.f32 %v1446, %v1766
    %v1831 = vadd.f32 %v1447, %v1767
    %v1832 = vadd.f32 %v1448, %v1768
    %v1833 = vadd.f32 %v1449, %v1769
    %v1834 = vadd.f32 %v1450, %v1770
    %v1835 = vadd.f32 %v1451, %v1771
    %v1836 = vadd.f32 %v1452, %v1772
    %v1837 = vadd.f32 %v1453, %v1773
    %v1838 = vadd.f32 %v1454, %v1774
    %v1839 = vadd.f32 %v1455, %v1775
    %v1840 = vadd.f32 %v1456, %v1776
    %v1841 = vadd.f32 %v1457, %v1777
    %v1842 = vadd.f32 %v1458, %v1778
    %v1843 = vadd.f32 %v1459, %v1779
    %v1844 = vadd.f32 %v1460, %v1780
    %v1845 = vadd.f32 %v1461, %v1781
    %v1846 = vadd.f32 %v1462, %v1782
    %v1847 = vadd.f32 %v1463, %v1783
    %v1848 = vadd.f32 %v1464, %v1784
    %v1849 = vadd.f32 %v1465, %v1785
    %v1850 = vadd.f32 %v1466, %v1786
    %v1851 = vadd.f32 %v1467, %v1787
    %v1852 = vadd.f32 %v1468, %v1788
    %v1853 = vadd.f32 %v1469, %v1789
    %v1854 = vadd.f32 %v1470, %v1790
    %v1855 = vadd.f32 %v1471, %v1791
    %v1856 = vadd.f32 %v1472, %v1792
    %v1857 = vadd.f32 %v1473, %v1793
    %v1858 = vadd.f32 %v1474, %v1794
    %v1859 = vadd.f32 %v1475, %v1795
    %v1860 = vadd.f32 %v1476, %v1796
    %v1861 = vadd.f32 %v1477, %v1797
    %v1862 = vadd.f32 %v1478, %v1798
    %v1863 = vadd.f32 %v1479, %v1799
    %v1864 = vadd.f32 %v1480, %v1800
    %v1865 = vadd.f32 %v1481, %v1801
    %v1866 = vadd.f32 %v1482, %v1802
    %v1867 = vadd.f32 %v1483, %v1803
    %v1868 = vadd.f32 %v1484, %v1804
    %v1869 = vadd.f32 %v1485, %v1805
    %v1870 = vadd.f32 %v1486, %v1806
    %v1871 = vadd.f32 %v1487, %v1807
    %v1872 = vadd.f32 %v1488, %v1808
    %v1873 = vadd.f32 %v1489, %v1809
    %v1874 = vadd.f32 %v1490, %v1810
    %v1875 = vadd.f32 %v1491, %v1811
    %v1876 = vadd.f32 %v1492, %v1812
    %v1877 = vadd.f32 %v1493, %v1813
    %v1878 = vadd.f32 %v1494, %v1814
    %v1879 = vadd.f32 %v1495, %v1815
    %v1880 = vadd.f32 %v1496, %v1816
    %v1881 = vadd.f32 %v1497, %v1817
    %v1882 = vadd.f32 %v1498, %v1818
    %v1883 = vadd.f32 %v1499, %v1819
    %v1884 = vadd.f32 %v1500, %v1820
    %v1885 = vadd.f32 %v1501, %v1821
    %v1886 = vadd.f32 %v1502, %v1822
    %v1887 = vadd.f32 %v1503, %v1823
    %v1888 = vadd.f32 %v1504, %v1824
    %v1889 = vld [vmem:[%s5] sm:$0xff]
    %v1890 = vld [vmem:[%s5 + $0x8] sm:$0xff]
    %v1891 = vld [vmem:[%s5 + $0x10] sm:$0xff]
    %v1892 = vld [vmem:[%s5 + $0x18] sm:$0xff]
    %v1893 = vld [vmem:[%s5 + $0x20] sm:$0xff]
    %v1894 = vld [vmem:[%s5 + $0x28] sm:$0xff]
    %v1895 = vld [vmem:[%s5 + $0x30] sm:$0xff]
    %v1896 = vld [vmem:[%s5 + $0x38] sm:$0xff]
    %v1897 = vld [vmem:[%s5 + $0x40] sm:$0xff]
    %v1898 = vld [vmem:[%s5 + $0x48] sm:$0xff]
    %v1899 = vld [vmem:[%s5 + $0x50] sm:$0xff]
    %v1900 = vld [vmem:[%s5 + $0x58] sm:$0xff]
    %v1901 = vld [vmem:[%s5 + $0x60] sm:$0xff]
    %v1902 = vld [vmem:[%s5 + $0x68] sm:$0xff]
    %v1903 = vld [vmem:[%s5 + $0x70] sm:$0xff]
    %v1904 = vld [vmem:[%s5 + $0x78] sm:$0xff]
    %v1905 = vld [vmem:[%s5 + $0x80] sm:$0xff]
    %vm1906 = vcmask 64512
    %v1908 = vsel %vm1906, %v1826, 0
    %v1911 = vsel %vm1906, %v1828, 0
    %v1914 = vsel %vm1906, %v1830, 0
    %v1917 = vsel %vm1906, %v1832, 0
    %v1920 = vsel %vm1906, %v1834, 0
    %v1923 = vsel %vm1906, %v1836, 0
    %v1926 = vsel %vm1906, %v1838, 0
    %v1929 = vsel %vm1906, %v1840, 0
    %v1932 = vsel %vm1906, %v1842, 0
    %v1935 = vsel %vm1906, %v1844, 0
    %v1938 = vsel %vm1906, %v1846, 0
    %v1941 = vsel %vm1906, %v1848, 0
    %v1944 = vsel %vm1906, %v1850, 0
    %v1947 = vsel %vm1906, %v1852, 0
    %v1950 = vsel %vm1906, %v1854, 0
    %v1953 = vsel %vm1906, %v1856, 0
    %v1956 = vsel %vm1906, %v1858, 0
    %v1959 = vsel %vm1906, %v1860, 0
    %v1962 = vsel %vm1906, %v1862, 0
    %v1965 = vsel %vm1906, %v1864, 0
    %v1968 = vsel %vm1906, %v1866, 0
    %v1971 = vsel %vm1906, %v1868, 0
    %v1974 = vsel %vm1906, %v1870, 0
    %v1977 = vsel %vm1906, %v1872, 0
    %v1980 = vsel %vm1906, %v1874, 0
    %v1983 = vsel %vm1906, %v1876, 0
    %v1986 = vsel %vm1906, %v1878, 0
    %v1989 = vsel %vm1906, %v1880, 0
    %v1992 = vsel %vm1906, %v1882, 0
    %v1995 = vsel %vm1906, %v1884, 0
    %v1998 = vsel %vm1906, %v1886, 0
    %v2001 = vsel %vm1906, %v1888, 0
    %2003 = vmatprep.subr.mxu0 0.0
    %2004 = vmatpush1.msra.mxu0 %v1889
    %2005 = vmatprep.subr.mxu0 0.0
    %2006 = vmatpush1.msra.mxu0 %v1890
    %2007 = vmatprep.subr.mxu0 0.0
    %2008 = vmatpush1.msra.mxu0 %v1891
    %2009 = vmatprep.subr.mxu0 0.0
    %2010 = vmatpush1.msra.mxu0 %v1892
    %2011 = vmatprep.subr.mxu0 0.0
    %2012 = vmatpush1.msra.mxu0 %v1893
    %2013 = vmatprep.subr.mxu0 0.0
    %2014 = vmatpush1.msra.mxu0 %v1894
    %2015 = vmatprep.subr.mxu0 0.0
    %2016 = vmatpush1.msra.mxu0 %v1895
    %2017 = vmatprep.subr.mxu0 0.0
    %2018 = vmatpush1.msra.mxu0 %v1896
    %2019 = vmatprep.subr.mxu0 0.0
    %2020 = vmatpush1.msra.mxu0 %v1897
    %2021 = vmatprep.subr.mxu0 0.0
    %2022 = vmatpush1.msra.mxu0 %v1898
    %2023 = vmatprep.subr.mxu0 0.0
    %2024 = vmatpush1.msra.mxu0 %v1899
    %2025 = vmatprep.subr.mxu0 0.0
    %2026 = vmatpush1.msra.mxu0 %v1900
    %2027 = vmatprep.subr.mxu0 0.0
    %2028 = vmatpush1.msra.mxu0 %v1901
    %2029 = vmatprep.subr.mxu0 0.0
    %2030 = vmatpush1.msra.mxu0 %v1902
    %2031 = vmatprep.subr.mxu0 0.0
    %2032 = vmatpush1.msra.mxu0 %v1903
    %2033 = vmatprep.subr.mxu0 0.0
    %2034 = vmatpush1.msra.mxu0 %v1904
    %2035 = vmatprep.subr.mxu0 0.0
    %2036 = vmatpush1.msra.mxu0 %v1905
    %2037 = vmatprep.subr.mxu0 0.0
    %2038 = vmatpush1.msra.mxu0 0.0
    %2039 = vmatprep.subr.mxu0 0.0
    %2040 = vmatpush1.msra.mxu0 0.0
    %2041 = vmatprep.subr.mxu0 0.0
    %2042 = vmatpush1.msra.mxu0 0.0
    %2043 = vmatprep.subr.mxu0 0.0
    %2044 = vmatpush1.msra.mxu0 0.0
    %2045 = vmatprep.subr.mxu0 0.0
    %2046 = vmatpush1.msra.mxu0 0.0
    %2047 = vmatprep.subr.mxu0 0.0
    %2048 = vmatpush1.msra.mxu0 0.0
    %2049 = vmatprep.subr.mxu0 0.0
    %2050 = vmatpush1.msra.mxu0 0.0
    %2051 = vmatprep.subr.mxu0 0.0
    %2052 = vmatpush1.msra.mxu0 0.0
    %2053 = vmatprep.subr.mxu0 0.0
    %2054 = vmatpush1.msra.mxu0 0.0
    %2055 = vmatprep.subr.mxu0 0.0
    %2056 = vmatpush1.msra.mxu0 0.0
    %2057 = vmatprep.subr.mxu0 0.0
    %2058 = vmatpush1.msra.mxu0 0.0
    %2059 = vmatprep.subr.mxu0 0.0
    %2060 = vmatpush1.msra.mxu0 0.0
    %2061 = vmatprep.subr.mxu0 0.0
    %2062 = vmatpush1.msra.mxu0 0.0
    %2063 = vmatprep.subr.mxu0 0.0
    %2064 = vmatpush1.msra.mxu0 0.0
    %2065 = vmatprep.subr.mxu0 0.0
    %2066 = vmatpush1.msra.mxu0 0.0
    %2067 = vmatprep.mubr.f32.mxu0 %v1908
    %2068 = vmatmul.mubr.f32.gmra.mrb[0].mxu0 %v1825
    %v2069 = vpop.f32.mrb[0].mxu0
    %v2070 = vadd.f32 0.0, %v2069
    %v2071 = vpop.f32.mrb[0].mxu0
    %2072 = vmatprep.mubr.f32.mxu0 %v1911
    %2073 = vmatmul.mubr.f32.gmra.mrb[0].mxu0 %v1827
    %v2074 = vpop.f32.mrb[0].mxu0
    %v2075 = vadd.f32 0.0, %v2074
    %v2076 = vpop.f32.mrb[0].mxu0
    %2077 = vmatprep.mubr.f32.mxu0 %v1914
    %2078 = vmatmul.mubr.f32.gmra.mrb[0].mxu0 %v1829
    %v2079 = vpop.f32.mrb[0].mxu0
    %v2080 = vadd.f32 0.0, %v2079
    %v2081 = vpop.f32.mrb[0].mxu0
    %2082 = vmatprep.mubr.f32.mxu0 %v1917
    %2083 = vmatmul.mubr.f32.gmra.mrb[0].mxu0 %v1831
    %v2084 = vpop.f32.mrb[0].mxu0
    %v2085 = vadd.f32 0.0, %v2084
    %v2086 = vpop.f32.mrb[0].mxu0
    %2087 = vmatprep.mubr.f32.mxu0 %v1920
    %2088 = vmatmul.mubr.f32.gmra.mrb[0].mxu0 %v1833
    %v2089 = vpop.f32.mrb[0].mxu0
    %v2090 = vadd.f32 0.0, %v2089
    %v2091 = vpop.f32.mrb[0].mxu0
    %2092 = vmatprep.mubr.f32.mxu0 %v1923
    %2093 = vmatmul.mubr.f32.gmra.mrb[0].mxu0 %v1835
    %v2094 = vpop.f32.mrb[0].mxu0
    %v2095 = vadd.f32 0.0, %v2094
    %v2096 = vpop.f32.mrb[0].mxu0
    %2097 = vmatprep.mubr.f32.mxu0 %v1926
    %2098 = vmatmul.mubr.f32.gmra.mrb[0].mxu0 %v1837
    %v2099 = vpop.f32.mrb[0].mxu0
    %v2100 = vadd.f32 0.0, %v2099
    %v2101 = vpop.f32.mrb[0].mxu0
    %2102 = vmatprep.mubr.f32.mxu0 %v1929
    %2103 = vmatmul.mubr.f32.gmra.mrb[0].mxu0 %v1839
    %v2104 = vpop.f32.mrb[0].mxu0
    %v2105 = vadd.f32 0.0, %v2104
    %v2106 = vpop.f32.mrb[0].mxu0
    %2107 = vmatprep.mubr.f32.mxu0 %v1932
    %2108 = vmatmul.mubr.f32.gmra.mrb[0].mxu0 %v1841
    %v2109 = vpop.f32.mrb[0].mxu0
    %v2110 = vadd.f32 0.0, %v2109
    %v2111 = vpop.f32.mrb[0].mxu0
    %2112 = vmatprep.mubr.f32.mxu0 %v1935
    %2113 = vmatmul.mubr.f32.gmra.mrb[0].mxu0 %v1843
    %v2114 = vpop.f32.mrb[0].mxu0
    %v2115 = vadd.f32 0.0, %v2114
    %v2116 = vpop.f32.mrb[0].mxu0
    %2117 = vmatprep.mubr.f32.mxu0 %v1938
    %2118 = vmatmul.mubr.f32.gmra.mrb[0].mxu0 %v1845
    %v2119 = vpop.f32.mrb[0].mxu0
    %v2120 = vadd.f32 0.0, %v2119
    %v2121 = vpop.f32.mrb[0].mxu0
    %2122 = vmatprep.mubr.f32.mxu0 %v1941
    %2123 = vmatmul.mubr.f32.gmra.mrb[0].mxu0 %v1847
    %v2124 = vpop.f32.mrb[0].mxu0
    %v2125 = vadd.f32 0.0, %v2124
    %v2126 = vpop.f32.mrb[0].mxu0
    %2127 = vmatprep.mubr.f32.mxu0 %v1944
    %2128 = vmatmul.mubr.f32.gmra.mrb[0].mxu0 %v1849
    %v2129 = vpop.f32.mrb[0].mxu0
    %v2130 = vadd.f32 0.0, %v2129
    %v2131 = vpop.f32.mrb[0].mxu0
    %2132 = vmatprep.mubr.f32.mxu0 %v1947
    %2133 = vmatmul.mubr.f32.gmra.mrb[0].mxu0 %v1851
    %v2134 = vpop.f32.mrb[0].mxu0
    %v2135 = vadd.f32 0.0, %v2134
    %v2136 = vpop.f32.mrb[0].mxu0
    %2137 = vmatprep.mubr.f32.mxu0 %v1950
    %2138 = vmatmul.mubr.f32.gmra.mrb[0].mxu0 %v1853
    %v2139 = vpop.f32.mrb[0].mxu0
    %v2140 = vadd.f32 0.0, %v2139
    %v2141 = vpop.f32.mrb[0].mxu0
    %2142 = vmatprep.mubr.f32.mxu0 %v1953
    %2143 = vmatmul.mubr.f32.gmra.mrb[0].mxu0 %v1855
    %v2144 = vpop.f32.mrb[0].mxu0
    %v2145 = vadd.f32 0.0, %v2144
    %v2146 = vpop.f32.mrb[0].mxu0
    %2147 = vmatprep.mubr.f32.mxu0 %v1956
    %2148 = vmatmul.mubr.f32.gmra.mrb[0].mxu0 %v1857
    %v2149 = vpop.f32.mrb[0].mxu0
    %v2150 = vadd.f32 0.0, %v2149
    %v2151 = vpop.f32.mrb[0].mxu0
    %2152 = vmatprep.mubr.f32.mxu0 %v1959
    %2153 = vmatmul.mubr.f32.gmra.mrb[0].mxu0 %v1859
    %v2154 = vpop.f32.mrb[0].mxu0
    %v2155 = vadd.f32 0.0, %v2154
    %v2156 = vpop.f32.mrb[0].mxu0
    %2157 = vmatprep.mubr.f32.mxu0 %v1962
    %2158 = vmatmul.mubr.f32.gmra.mrb[0].mxu0 %v1861
    %v2159 = vpop.f32.mrb[0].mxu0
    %v2160 = vadd.f32 0.0, %v2159
    %v2161 = vpop.f32.mrb[0].mxu0
    %2162 = vmatprep.mubr.f32.mxu0 %v1965
    %2163 = vmatmul.mubr.f32.gmra.mrb[0].mxu0 %v1863
    %v2164 = vpop.f32.mrb[0].mxu0
    %v2165 = vadd.f32 0.0, %v2164
    %v2166 = vpop.f32.mrb[0].mxu0
    %2167 = vmatprep.mubr.f32.mxu0 %v1968
    %2168 = vmatmul.mubr.f32.gmra.mrb[0].mxu0 %v1865
    %v2169 = vpop.f32.mrb[0].mxu0
    %v2170 = vadd.f32 0.0, %v2169
    %v2171 = vpop.f32.mrb[0].mxu0
    %2172 = vmatprep.mubr.f32.mxu0 %v1971
    %2173 = vmatmul.mubr.f32.gmra.mrb[0].mxu0 %v1867
    %v2174 = vpop.f32.mrb[0].mxu0
    %v2175 = vadd.f32 0.0, %v2174
    %v2176 = vpop.f32.mrb[0].mxu0
    %2177 = vmatprep.mubr.f32.mxu0 %v1974
    %2178 = vmatmul.mubr.f32.gmra.mrb[0].mxu0 %v1869
    %v2179 = vpop.f32.mrb[0].mxu0
    %v2180 = vadd.f32 0.0, %v2179
    %v2181 = vpop.f32.mrb[0].mxu0
    %2182 = vmatprep.mubr.f32.mxu0 %v1977
    %2183 = vmatmul.mubr.f32.gmra.mrb[0].mxu0 %v1871
    %v2184 = vpop.f32.mrb[0].mxu0
    %v2185 = vadd.f32 0.0, %v2184
    %v2186 = vpop.f32.mrb[0].mxu0
    %2187 = vmatprep.mubr.f32.mxu0 %v1980
    %2188 = vmatmul.mubr.f32.gmra.mrb[0].mxu0 %v1873
    %v2189 = vpop.f32.mrb[0].mxu0
    %v2190 = vadd.f32 0.0, %v2189
    %v2191 = vpop.f32.mrb[0].mxu0
    %2192 = vmatprep.mubr.f32.mxu0 %v1983
    %2193 = vmatmul.mubr.f32.gmra.mrb[0].mxu0 %v1875
    %v2194 = vpop.f32.mrb[0].mxu0
    %v2195 = vadd.f32 0.0, %v2194
    %v2196 = vpop.f32.mrb[0].mxu0
    %2197 = vmatprep.mubr.f32.mxu0 %v1986
    %2198 = vmatmul.mubr.f32.gmra.mrb[0].mxu0 %v1877
    %v2199 = vpop.f32.mrb[0].mxu0
    %v2200 = vadd.f32 0.0, %v2199
    %v2201 = vpop.f32.mrb[0].mxu0
    %2202 = vmatprep.mubr.f32.mxu0 %v1989
    %2203 = vmatmul.mubr.f32.gmra.mrb[0].mxu0 %v1879
    %v2204 = vpop.f32.mrb[0].mxu0
    %v2205 = vadd.f32 0.0, %v2204
    %v2206 = vpop.f32.mrb[0].mxu0
    %2207 = vmatprep.mubr.f32.mxu0 %v1992
    %2208 = vmatmul.mubr.f32.gmra.mrb[0].mxu0 %v1881
    %v2209 = vpop.f32.mrb[0].mxu0
    %v2210 = vadd.f32 0.0, %v2209
    %v2211 = vpop.f32.mrb[0].mxu0
    %2212 = vmatprep.mubr.f32.mxu0 %v1995
    %2213 = vmatmul.mubr.f32.gmra.mrb[0].mxu0 %v1883
    %v2214 = vpop.f32.mrb[0].mxu0
    %v2215 = vadd.f32 0.0, %v2214
    %v2216 = vpop.f32.mrb[0].mxu0
    %2217 = vmatprep.mubr.f32.mxu0 %v1998
    %2218 = vmatmul.mubr.f32.gmra.mrb[0].mxu0 %v1885
    %v2219 = vpop.f32.mrb[0].mxu0
    %v2220 = vadd.f32 0.0, %v2219
    %v2221 = vpop.f32.mrb[0].mxu0
    %2222 = vmatprep.mubr.f32.mxu0 %v2001
    %2223 = vmatmul.mubr.f32.gmra.mrb[0].mxu0 %v1887
    %v2224 = vpop.f32.mrb[0].mxu0
    %v2225 = vadd.f32 0.0, %v2224
    %v2226 = vpop.f32.mrb[0].mxu0
    %2227 = vdwg.mxu0
    %2228 = vadd.xlane.f32.xlu0 %v2070
    %v2229 = vpop.xlane.xlu0 %2228
    %2230 = vadd.xlane.f32.xlu0 %v2075
    %v2231 = vpop.xlane.xlu0 %2230
    %2232 = vadd.xlane.f32.xlu0 %v2080
    %v2233 = vpop.xlane.xlu0 %2232
    %2234 = vadd.xlane.f32.xlu0 %v2085
    %v2235 = vpop.xlane.xlu0 %2234
    %2236 = vadd.xlane.f32.xlu0 %v2090
    %v2237 = vpop.xlane.xlu0 %2236
    %2238 = vadd.xlane.f32.xlu0 %v2095
    %v2239 = vpop.xlane.xlu0 %2238
    %2240 = vadd.xlane.f32.xlu0 %v2100
    %v2241 = vpop.xlane.xlu0 %2240
    %2242 = vadd.xlane.f32.xlu0 %v2105
    %v2243 = vpop.xlane.xlu0 %2242
    %2244 = vadd.xlane.f32.xlu0 %v2110
    %v2245 = vpop.xlane.xlu0 %2244
    %2246 = vadd.xlane.f32.xlu0 %v2115
    %v2247 = vpop.xlane.xlu0 %2246
    %2248 = vadd.xlane.f32.xlu0 %v2120
    %v2249 = vpop.xlane.xlu0 %2248
    %2250 = vadd.xlane.f32.xlu0 %v2125
    %v2251 = vpop.xlane.xlu0 %2250
    %2252 = vadd.xlane.f32.xlu0 %v2130
    %v2253 = vpop.xlane.xlu0 %2252
    %2254 = vadd.xlane.f32.xlu0 %v2135
    %v2255 = vpop.xlane.xlu0 %2254
    %2256 = vadd.xlane.f32.xlu0 %v2140
    %v2257 = vpop.xlane.xlu0 %2256
    %2258 = vadd.xlane.f32.xlu0 %v2145
    %v2259 = vpop.xlane.xlu0 %2258
    %2260 = vadd.xlane.f32.xlu0 %v2150
    %v2261 = vpop.xlane.xlu0 %2260
    %2262 = vadd.xlane.f32.xlu0 %v2155
    %v2263 = vpop.xlane.xlu0 %2262
    %2264 = vadd.xlane.f32.xlu0 %v2160
    %v2265 = vpop.xlane.xlu0 %2264
    %2266 = vadd.xlane.f32.xlu0 %v2165
    %v2267 = vpop.xlane.xlu0 %2266
    %2268 = vadd.xlane.f32.xlu0 %v2170
    %v2269 = vpop.xlane.xlu0 %2268
    %2270 = vadd.xlane.f32.xlu0 %v2175
    %v2271 = vpop.xlane.xlu0 %2270
    %2272 = vadd.xlane.f32.xlu0 %v2180
    %v2273 = vpop.xlane.xlu0 %2272
    %2274 = vadd.xlane.f32.xlu0 %v2185
    %v2275 = vpop.xlane.xlu0 %2274
    %2276 = vadd.xlane.f32.xlu0 %v2190
    %v2277 = vpop.xlane.xlu0 %2276
    %2278 = vadd.xlane.f32.xlu0 %v2195
    %v2279 = vpop.xlane.xlu0 %2278
    %2280 = vadd.xlane.f32.xlu0 %v2200
    %v2281 = vpop.xlane.xlu0 %2280
    %2282 = vadd.xlane.f32.xlu0 %v2205
    %v2283 = vpop.xlane.xlu0 %2282
    %2284 = vadd.xlane.f32.xlu0 %v2210
    %v2285 = vpop.xlane.xlu0 %2284
    %2286 = vadd.xlane.f32.xlu0 %v2215
    %v2287 = vpop.xlane.xlu0 %2286
    %2288 = vadd.xlane.f32.xlu0 %v2220
    %v2289 = vpop.xlane.xlu0 %2288
    %2290 = vadd.xlane.f32.xlu0 %v2225
    %v2291 = vpop.xlane.xlu0 %2290
    %v2292 = vrcp.pop 128.0
    %v2293 = vmul.f32 %v2229, %v2292
    %v2294 = vmul.f32 %v2231, %v2292
    %v2295 = vmul.f32 %v2233, %v2292
    %v2296 = vmul.f32 %v2235, %v2292
    %v2297 = vmul.f32 %v2237, %v2292
    %v2298 = vmul.f32 %v2239, %v2292
    %v2299 = vmul.f32 %v2241, %v2292
    %v2300 = vmul.f32 %v2243, %v2292
    %v2301 = vmul.f32 %v2245, %v2292
    %v2302 = vmul.f32 %v2247, %v2292
    %v2303 = vmul.f32 %v2249, %v2292
    %v2304 = vmul.f32 %v2251, %v2292
    %v2305 = vmul.f32 %v2253, %v2292
    %v2306 = vmul.f32 %v2255, %v2292
    %v2307 = vmul.f32 %v2257, %v2292
    %v2308 = vmul.f32 %v2259, %v2292
    %v2309 = vmul.f32 %v2261, %v2292
    %v2310 = vmul.f32 %v2263, %v2292
    %v2311 = vmul.f32 %v2265, %v2292
    %v2312 = vmul.f32 %v2267, %v2292
    %v2313 = vmul.f32 %v2269, %v2292
    %v2314 = vmul.f32 %v2271, %v2292
    %v2315 = vmul.f32 %v2273, %v2292
    %v2316 = vmul.f32 %v2275, %v2292
    %v2317 = vmul.f32 %v2277, %v2292
    %v2318 = vmul.f32 %v2279, %v2292
    %v2319 = vmul.f32 %v2281, %v2292
    %v2320 = vmul.f32 %v2283, %v2292
    %v2321 = vmul.f32 %v2285, %v2292
    %v2322 = vmul.f32 %v2287, %v2292
    %v2323 = vmul.f32 %v2289, %v2292
    %v2324 = vmul.f32 %v2291, %v2292
    %v2325 = vsub.f32 %v2070, %v2293
    %v2326 = vsub.f32 %v2075, %v2294
    %v2327 = vsub.f32 %v2080, %v2295
    %v2328 = vsub.f32 %v2085, %v2296
    %v2329 = vsub.f32 %v2090, %v2297
    %v2330 = vsub.f32 %v2095, %v2298
    %v2331 = vsub.f32 %v2100, %v2299
    %v2332 = vsub.f32 %v2105, %v2300
    %v2333 = vsub.f32 %v2110, %v2301
    %v2334 = vsub.f32 %v2115, %v2302
    %v2335 = vsub.f32 %v2120, %v2303
    %v2336 = vsub.f32 %v2125, %v2304
    %v2337 = vsub.f32 %v2130, %v2305
    %v2338 = vsub.f32 %v2135, %v2306
    %v2339 = vsub.f32 %v2140, %v2307
    %v2340 = vsub.f32 %v2145, %v2308
    %v2341 = vsub.f32 %v2150, %v2309
    %v2342 = vsub.f32 %v2155, %v2310
    %v2343 = vsub.f32 %v2160, %v2311
    %v2344 = vsub.f32 %v2165, %v2312
    %v2345 = vsub.f32 %v2170, %v2313
    %v2346 = vsub.f32 %v2175, %v2314
    %v2347 = vsub.f32 %v2180, %v2315
    %v2348 = vsub.f32 %v2185, %v2316
    %v2349 = vsub.f32 %v2190, %v2317
    %v2350 = vsub.f32 %v2195, %v2318
    %v2351 = vsub.f32 %v2200, %v2319
    %v2352 = vsub.f32 %v2205, %v2320
    %v2353 = vsub.f32 %v2210, %v2321
    %v2354 = vsub.f32 %v2215, %v2322
    %v2355 = vsub.f32 %v2220, %v2323
    %v2356 = vsub.f32 %v2225, %v2324
    %v2357 = vmul.f32 %v2325, %v2325
    %v2358 = vmul.f32 %v2326, %v2326
    %v2359 = vmul.f32 %v2327, %v2327
    %v2360 = vmul.f32 %v2328, %v2328
    %v2361 = vmul.f32 %v2329, %v2329
    %v2362 = vmul.f32 %v2330, %v2330
    %v2363 = vmul.f32 %v2331, %v2331
    %v2364 = vmul.f32 %v2332, %v2332
    %v2365 = vmul.f32 %v2333, %v2333
    %v2366 = vmul.f32 %v2334, %v2334
    %v2367 = vmul.f32 %v2335, %v2335
    %v2368 = vmul.f32 %v2336, %v2336
    %v2369 = vmul.f32 %v2337, %v2337
    %v2370 = vmul.f32 %v2338, %v2338
    %v2371 = vmul.f32 %v2339, %v2339
    %v2372 = vmul.f32 %v2340, %v2340
    %v2373 = vmul.f32 %v2341, %v2341
    %v2374 = vmul.f32 %v2342, %v2342
    %v2375 = vmul.f32 %v2343, %v2343
    %v2376 = vmul.f32 %v2344, %v2344
    %v2377 = vmul.f32 %v2345, %v2345
    %v2378 = vmul.f32 %v2346, %v2346
    %v2379 = vmul.f32 %v2347, %v2347
    %v2380 = vmul.f32 %v2348, %v2348
    %v2381 = vmul.f32 %v2349, %v2349
    %v2382 = vmul.f32 %v2350, %v2350
    %v2383 = vmul.f32 %v2351, %v2351
    %v2384 = vmul.f32 %v2352, %v2352
    %v2385 = vmul.f32 %v2353, %v2353
    %v2386 = vmul.f32 %v2354, %v2354
    %v2387 = vmul.f32 %v2355, %v2355
    %v2388 = vmul.f32 %v2356, %v2356
    %2389 = vadd.xlane.f32.xlu0 %v2357
    %v2390 = vpop.xlane.xlu0 %2389
    %2391 = vadd.xlane.f32.xlu0 %v2358
    %v2392 = vpop.xlane.xlu0 %2391
    %2393 = vadd.xlane.f32.xlu0 %v2359
    %v2394 = vpop.xlane.xlu0 %2393
    %2395 = vadd.xlane.f32.xlu0 %v2360
    %v2396 = vpop.xlane.xlu0 %2395
    %2397 = vadd.xlane.f32.xlu0 %v2361
    %v2398 = vpop.xlane.xlu0 %2397
    %2399 = vadd.xlane.f32.xlu0 %v2362
    %v2400 = vpop.xlane.xlu0 %2399
    %2401 = vadd.xlane.f32.xlu0 %v2363
    %v2402 = vpop.xlane.xlu0 %2401
    %2403 = vadd.xlane.f32.xlu0 %v2364
    %v2404 = vpop.xlane.xlu0 %2403
    %2405 = vadd.xlane.f32.xlu0 %v2365
    %v2406 = vpop.xlane.xlu0 %2405
    %2407 = vadd.xlane.f32.xlu0 %v2366
    %v2408 = vpop.xlane.xlu0 %2407
    %2409 = vadd.xlane.f32.xlu0 %v2367
    %v2410 = vpop.xlane.xlu0 %2409
    %2411 = vadd.xlane.f32.xlu0 %v2368
    %v2412 = vpop.xlane.xlu0 %2411
    %2413 = vadd.xlane.f32.xlu0 %v2369
    %v2414 = vpop.xlane.xlu0 %2413
    %2415 = vadd.xlane.f32.xlu0 %v2370
    %v2416 = vpop.xlane.xlu0 %2415
    %2417 = vadd.xlane.f32.xlu0 %v2371
    %v2418 = vpop.xlane.xlu0 %2417
    %2419 = vadd.xlane.f32.xlu0 %v2372
    %v2420 = vpop.xlane.xlu0 %2419
    %2421 = vadd.xlane.f32.xlu0 %v2373
    %v2422 = vpop.xlane.xlu0 %2421
    %2423 = vadd.xlane.f32.xlu0 %v2374
    %v2424 = vpop.xlane.xlu0 %2423
    %2425 = vadd.xlane.f32.xlu0 %v2375
    %v2426 = vpop.xlane.xlu0 %2425
    %2427 = vadd.xlane.f32.xlu0 %v2376
    %v2428 = vpop.xlane.xlu0 %2427
    %2429 = vadd.xlane.f32.xlu0 %v2377
    %v2430 = vpop.xlane.xlu0 %2429
    %2431 = vadd.xlane.f32.xlu0 %v2378
    %v2432 = vpop.xlane.xlu0 %2431
    %2433 = vadd.xlane.f32.xlu0 %v2379
    %v2434 = vpop.xlane.xlu0 %2433
    %2435 = vadd.xlane.f32.xlu0 %v2380
    %v2436 = vpop.xlane.xlu0 %2435
    %2437 = vadd.xlane.f32.xlu0 %v2381
    %v2438 = vpop.xlane.xlu0 %2437
    %2439 = vadd.xlane.f32.xlu0 %v2382
    %v2440 = vpop.xlane.xlu0 %2439
    %2441 = vadd.xlane.f32.xlu0 %v2383
    %v2442 = vpop.xlane.xlu0 %2441
    %2443 = vadd.xlane.f32.xlu0 %v2384
    %v2444 = vpop.xlane.xlu0 %2443
    %2445 = vadd.xlane.f32.xlu0 %v2385
    %v2446 = vpop.xlane.xlu0 %2445
    %2447 = vadd.xlane.f32.xlu0 %v2386
    %v2448 = vpop.xlane.xlu0 %2447
    %2449 = vadd.xlane.f32.xlu0 %v2387
    %v2450 = vpop.xlane.xlu0 %2449
    %2451 = vadd.xlane.f32.xlu0 %v2388
    %v2452 = vpop.xlane.xlu0 %2451
    %v2453 = vmul.f32 %v2390, %v2292
    %v2454 = vmul.f32 %v2392, %v2292
    %v2455 = vmul.f32 %v2394, %v2292
    %v2456 = vmul.f32 %v2396, %v2292
    %v2457 = vmul.f32 %v2398, %v2292
    %v2458 = vmul.f32 %v2400, %v2292
    %v2459 = vmul.f32 %v2402, %v2292
    %v2460 = vmul.f32 %v2404, %v2292
    %v2461 = vmul.f32 %v2406, %v2292
    %v2462 = vmul.f32 %v2408, %v2292
    %v2463 = vmul.f32 %v2410, %v2292
    %v2464 = vmul.f32 %v2412, %v2292
    %v2465 = vmul.f32 %v2414, %v2292
    %v2466 = vmul.f32 %v2416, %v2292
    %v2467 = vmul.f32 %v2418, %v2292
    %v2468 = vmul.f32 %v2420, %v2292
    %v2469 = vmul.f32 %v2422, %v2292
    %v2470 = vmul.f32 %v2424, %v2292
    %v2471 = vmul.f32 %v2426, %v2292
    %v2472 = vmul.f32 %v2428, %v2292
    %v2473 = vmul.f32 %v2430, %v2292
    %v2474 = vmul.f32 %v2432, %v2292
    %v2475 = vmul.f32 %v2434, %v2292
    %v2476 = vmul.f32 %v2436, %v2292
    %v2477 = vmul.f32 %v2438, %v2292
    %v2478 = vmul.f32 %v2440, %v2292
    %v2479 = vmul.f32 %v2442, %v2292
    %v2480 = vmul.f32 %v2444, %v2292
    %v2481 = vmul.f32 %v2446, %v2292
    %v2482 = vmul.f32 %v2448, %v2292
    %v2483 = vmul.f32 %v2450, %v2292
    %v2484 = vmul.f32 %v2452, %v2292
    %v2485 = vadd.f32 %v2453, 1e-12
    %v2486 = vadd.f32 %v2454, 1e-12
    %v2487 = vadd.f32 %v2455, 1e-12
    %v2488 = vadd.f32 %v2456, 1e-12
    %v2489 = vadd.f32 %v2457, 1e-12
    %v2490 = vadd.f32 %v2458, 1e-12
    %v2491 = vadd.f32 %v2459, 1e-12
    %v2492 = vadd.f32 %v2460, 1e-12
    %v2493 = vadd.f32 %v2461, 1e-12
    %v2494 = vadd.f32 %v2462, 1e-12
    %v2495 = vadd.f32 %v2463, 1e-12
    %v2496 = vadd.f32 %v2464, 1e-12
    %v2497 = vadd.f32 %v2465, 1e-12
    %v2498 = vadd.f32 %v2466, 1e-12
    %v2499 = vadd.f32 %v2467, 1e-12
    %v2500 = vadd.f32 %v2468, 1e-12
    %v2501 = vadd.f32 %v2469, 1e-12
    %v2502 = vadd.f32 %v2470, 1e-12
    %v2503 = vadd.f32 %v2471, 1e-12
    %v2504 = vadd.f32 %v2472, 1e-12
    %v2505 = vadd.f32 %v2473, 1e-12
    %v2506 = vadd.f32 %v2474, 1e-12
    %v2507 = vadd.f32 %v2475, 1e-12
    %v2508 = vadd.f32 %v2476, 1e-12
    %v2509 = vadd.f32 %v2477, 1e-12
    %v2510 = vadd.f32 %v2478, 1e-12
    %v2511 = vadd.f32 %v2479, 1e-12
    %v2512 = vadd.f32 %v2480, 1e-12
    %v2513 = vadd.f32 %v2481, 1e-12
    %v2514 = vadd.f32 %v2482, 1e-12
    %v2515 = vadd.f32 %v2483, 1e-12
    %v2516 = vadd.f32 %v2484, 1e-12
    %v2517 = vrsqrt.pop %v2485
    %v2518 = vrsqrt.pop %v2486
    %v2519 = vrsqrt.pop %v2487
    %v2520 = vrsqrt.pop %v2488
    %v2521 = vrsqrt.pop %v2489
    %v2522 = vrsqrt.pop %v2490
    %v2523 = vrsqrt.pop %v2491
    %v2524 = vrsqrt.pop %v2492
    %v2525 = vrsqrt.pop %v2493
    %v2526 = vrsqrt.pop %v2494
    %v2527 = vrsqrt.pop %v2495
    %v2528 = vrsqrt.pop %v2496
    %v2529 = vrsqrt.pop %v2497
    %v2530 = vrsqrt.pop %v2498
    %v2531 = vrsqrt.pop %v2499
    %v2532 = vrsqrt.pop %v2500
    %v2533 = vrsqrt.pop %v2501
    %v2534 = vrsqrt.pop %v2502
    %v2535 = vrsqrt.pop %v2503
    %v2536 = vrsqrt.pop %v2504
    %v2537 = vrsqrt.pop %v2505
    %v2538 = vrsqrt.pop %v2506
    %v2539 = vrsqrt.pop %v2507
    %v2540 = vrsqrt.pop %v2508
    %v2541 = vrsqrt.pop %v2509
    %v2542 = vrsqrt.pop %v2510
    %v2543 = vrsqrt.pop %v2511
    %v2544 = vrsqrt.pop %v2512
    %v2545 = vrsqrt.pop %v2513
    %v2546 = vrsqrt.pop %v2514
    %v2547 = vrsqrt.pop %v2515
    %v2548 = vrsqrt.pop %v2516
    %v2549 = vmul.f32 %v2325, %v2517
    %v2550 = vmul.f32 %v2326, %v2518
    %v2551 = vmul.f32 %v2327, %v2519
    %v2552 = vmul.f32 %v2328, %v2520
    %v2553 = vmul.f32 %v2329, %v2521
    %v2554 = vmul.f32 %v2330, %v2522
    %v2555 = vmul.f32 %v2331, %v2523
    %v2556 = vmul.f32 %v2332, %v2524
    %v2557 = vmul.f32 %v2333, %v2525
    %v2558 = vmul.f32 %v2334, %v2526
    %v2559 = vmul.f32 %v2335, %v2527
    %v2560 = vmul.f32 %v2336, %v2528
    %v2561 = vmul.f32 %v2337, %v2529
    %v2562 = vmul.f32 %v2338, %v2530
    %v2563 = vmul.f32 %v2339, %v2531
    %v2564 = vmul.f32 %v2340, %v2532
    %v2565 = vmul.f32 %v2341, %v2533
    %v2566 = vmul.f32 %v2342, %v2534
    %v2567 = vmul.f32 %v2343, %v2535
    %v2568 = vmul.f32 %v2344, %v2536
    %v2569 = vmul.f32 %v2345, %v2537
    %v2570 = vmul.f32 %v2346, %v2538
    %v2571 = vmul.f32 %v2347, %v2539
    %v2572 = vmul.f32 %v2348, %v2540
    %v2573 = vmul.f32 %v2349, %v2541
    %v2574 = vmul.f32 %v2350, %v2542
    %v2575 = vmul.f32 %v2351, %v2543
    %v2576 = vmul.f32 %v2352, %v2544
    %v2577 = vmul.f32 %v2353, %v2545
    %v2578 = vmul.f32 %v2354, %v2546
    %v2579 = vmul.f32 %v2355, %v2547
    %v2580 = vmul.f32 %v2356, %v2548
    %v2581 = vld [vmem:[%s6] sm:$0x1]
    %v2583 = vlaneseq
    %v2584 = vshrl.u32 %v2583, 7
    %v2585 = vsub.s32 0, %v2584
    %v2586 = vrot.slane %v2581, %v2585
    %v2588 = vmul.f32 %v2549, %v2586
    %v2589 = vmul.f32 %v2550, %v2586
    %v2590 = vmul.f32 %v2551, %v2586
    %v2591 = vmul.f32 %v2552, %v2586
    %v2592 = vmul.f32 %v2553, %v2586
    %v2593 = vmul.f32 %v2554, %v2586
    %v2594 = vmul.f32 %v2555, %v2586
    %v2595 = vmul.f32 %v2556, %v2586
    %v2596 = vmul.f32 %v2557, %v2586
    %v2597 = vmul.f32 %v2558, %v2586
    %v2598 = vmul.f32 %v2559, %v2586
    %v2599 = vmul.f32 %v2560, %v2586
    %v2600 = vmul.f32 %v2561, %v2586
    %v2601 = vmul.f32 %v2562, %v2586
    %v2602 = vmul.f32 %v2563, %v2586
    %v2603 = vmul.f32 %v2564, %v2586
    %v2604 = vmul.f32 %v2565, %v2586
    %v2605 = vmul.f32 %v2566, %v2586
    %v2606 = vmul.f32 %v2567, %v2586
    %v2607 = vmul.f32 %v2568, %v2586
    %v2608 = vmul.f32 %v2569, %v2586
    %v2609 = vmul.f32 %v2570, %v2586
    %v2610 = vmul.f32 %v2571, %v2586
    %v2611 = vmul.f32 %v2572, %v2586
    %v2612 = vmul.f32 %v2573, %v2586
    %v2613 = vmul.f32 %v2574, %v2586
    %v2614 = vmul.f32 %v2575, %v2586
    %v2615 = vmul.f32 %v2576, %v2586
    %v2616 = vmul.f32 %v2577, %v2586
    %v2617 = vmul.f32 %v2578, %v2586
    %v2618 = vmul.f32 %v2579, %v2586
    %v2619 = vmul.f32 %v2580, %v2586
    %v2620 = vld [vmem:[%s7] sm:$0x1]
    %v2622 = vlaneseq
    %v2623 = vshrl.u32 %v2622, 7
    %v2624 = vsub.s32 0, %v2623
    %v2625 = vrot.slane %v2620, %v2624
    %v2627 = vadd.f32 %v2588, %v2625
    %v2628 = vadd.f32 %v2589, %v2625
    %v2629 = vadd.f32 %v2590, %v2625
    %v2630 = vadd.f32 %v2591, %v2625
    %v2631 = vadd.f32 %v2592, %v2625
    %v2632 = vadd.f32 %v2593, %v2625
    %v2633 = vadd.f32 %v2594, %v2625
    %v2634 = vadd.f32 %v2595, %v2625
    %v2635 = vadd.f32 %v2596, %v2625
    %v2636 = vadd.f32 %v2597, %v2625
    %v2637 = vadd.f32 %v2598, %v2625
    %v2638 = vadd.f32 %v2599, %v2625
    %v2639 = vadd.f32 %v2600, %v2625
    %v2640 = vadd.f32 %v2601, %v2625
    %v2641 = vadd.f32 %v2602, %v2625
    %v2642 = vadd.f32 %v2603, %v2625
    %v2643 = vadd.f32 %v2604, %v2625
    %v2644 = vadd.f32 %v2605, %v2625
    %v2645 = vadd.f32 %v2606, %v2625
    %v2646 = vadd.f32 %v2607, %v2625
    %v2647 = vadd.f32 %v2608, %v2625
    %v2648 = vadd.f32 %v2609, %v2625
    %v2649 = vadd.f32 %v2610, %v2625
    %v2650 = vadd.f32 %v2611, %v2625
    %v2651 = vadd.f32 %v2612, %v2625
    %v2652 = vadd.f32 %v2613, %v2625
    %v2653 = vadd.f32 %v2614, %v2625
    %v2654 = vadd.f32 %v2615, %v2625
    %v2655 = vadd.f32 %v2616, %v2625
    %v2656 = vadd.f32 %v2617, %v2625
    %v2657 = vadd.f32 %v2618, %v2625
    %v2658 = vadd.f32 %v2619, %v2625
    %2659 = vst [vmem:[#allocation2] sm:$0xff] %v2627
    %2660 = vst [vmem:[#allocation2 + $0x8] sm:$0xff] %v2628
    %2661 = vst [vmem:[#allocation2 + $0x10] sm:$0xff] %v2629
    %2662 = vst [vmem:[#allocation2 + $0x18] sm:$0xff] %v2630
    %2663 = vst [vmem:[#allocation2 + $0x20] sm:$0xff] %v2631
    %2664 = vst [vmem:[#allocation2 + $0x28] sm:$0xff] %v2632
    %2665 = vst [vmem:[#allocation2 + $0x30] sm:$0xff] %v2633
    %2666 = vst [vmem:[#allocation2 + $0x38] sm:$0xff] %v2634
    %2667 = vst [vmem:[#allocation2 + $0x40] sm:$0xff] %v2635
    %2668 = vst [vmem:[#allocation2 + $0x48] sm:$0xff] %v2636
    %2669 = vst [vmem:[#allocation2 + $0x50] sm:$0xff] %v2637
    %2670 = vst [vmem:[#allocation2 + $0x58] sm:$0xff] %v2638
    %2671 = vst [vmem:[#allocation2 + $0x60] sm:$0xff] %v2639
    %2672 = vst [vmem:[#allocation2 + $0x68] sm:$0xff] %v2640
    %2673 = vst [vmem:[#allocation2 + $0x70] sm:$0xff] %v2641
    %2674 = vst [vmem:[#allocation2 + $0x78] sm:$0xff] %v2642
    %2675 = vst [vmem:[#allocation2 + $0x80] sm:$0xff] %v2643
    %2676 = vst [vmem:[#allocation2 + $0x88] sm:$0xff] %v2644
    %2677 = vst [vmem:[#allocation2 + $0x90] sm:$0xff] %v2645
    %2678 = vst [vmem:[#allocation2 + $0x98] sm:$0xff] %v2646
    %2679 = vst [vmem:[#allocation2 + $0xa0] sm:$0xff] %v2647
    %2680 = vst [vmem:[#allocation2 + $0xa8] sm:$0xff] %v2648
    %2681 = vst [vmem:[#allocation2 + $0xb0] sm:$0xff] %v2649
    %2682 = vst [vmem:[#allocation2 + $0xb8] sm:$0xff] %v2650
    %2683 = vst [vmem:[#allocation2 + $0xc0] sm:$0xff] %v2651
    %2684 = vst [vmem:[#allocation2 + $0xc8] sm:$0xff] %v2652
    %2685 = vst [vmem:[#allocation2 + $0xd0] sm:$0xff] %v2653
    %2686 = vst [vmem:[#allocation2 + $0xd8] sm:$0xff] %v2654
    %2687 = vst [vmem:[#allocation2 + $0xe0] sm:$0xff] %v2655
    %2688 = vst [vmem:[#allocation2 + $0xe8] sm:$0xff] %v2656
    %2689 = vst [vmem:[#allocation2 + $0xf0] sm:$0xff] %v2657
    %2690 = vst [vmem:[#allocation2 + $0xf8] sm:$0xff] %v2658
    // Predicated region
    $region34: #{tpu_custom_call.1} parent=1 // pred_check
      _
    $region35: #{tpu_custom_call.1} parent=1 // pred_check_branch
      %2692 = sbr.rel (0) target = $region37
    $region36: #{tpu_custom_call.1} parent=1 // pred_region
      %s2694 = ssub.s32 4096, 4096
      %2695 = vsyncadd [#allocation3], %s2694
      %s2696 = sshll.u32 [#allocation2], 4
      %s2697 = int_to_ptr.vmem [resolvable:$true] %s2696
      %2702 = dma.vmem_to_hbm [thread:$0]  %s2697, 4096, %s8, [#allocation3], 128, 128, 8
    $region37: #{tpu_custom_call.1} parent=1 // pred_fallthru
      _
    // Predicated region
    $region38: #{tpu_custom_call.1} parent=1 // pred_check
      _
    $region39: #{tpu_custom_call.1} parent=1 // pred_check_branch
      %2704 = sbr.rel (0) target = $region41
    $region40: #{tpu_custom_call.1} parent=1 // pred_region
      %2705 = dma.done [#allocation3], 4096
    $region41: #{tpu_custom_call.1} parent=1 // pred_fallthru
      _
    %2706 = vsyncpa [#allocation3], 1

</llo_original>
